<compile_context>
chip_gen: v5e
topology: v5e:2x2
jax: 0.10.0
libtpu: 0.0.40
codegen_flags: <defaults>
</compile_context>

<pallas_src>
import functools

import jax
import jax.numpy as jnp
from jax.experimental import pallas as pl
from jax.experimental.pallas import tpu as pltpu


def _fused_mlp_kernel(x_ref, w1_ref, b1_ref, w2_ref, b2_ref, w3_ref, b3_ref,
                      o_ref, h1_acc, *, compute_dtype):
    """Fused  relu(x@W1+b1) -> relu(.@W2+b2) -> .@W3+b3  with K-streamed W1.

    Grid = (K1 // tk,): layer-1 reduction axis.  W2/W3/biases are VMEM
    resident; the hidden activation lives in a (B, HIDDEN) f32 VMEM scratch.
    """
    k = pl.program_id(0)

    @pl.when(k == 0)
    def _init():
        h1_acc[...] = jnp.zeros_like(h1_acc)

    # Layer-1 partial product on this K slab: (B, tk) @ (tk, HIDDEN), f32 acc.
    h1_acc[...] += jnp.dot(x_ref[...], w1_ref[...],
                           preferred_element_type=jnp.float32)

    @pl.when(k == pl.num_programs(0) - 1)
    def _finalize():
        # Layer 1 epilogue: bias + ReLU (dropout = identity in eval mode).
        h1 = jnp.maximum(h1_acc[...] + b1_ref[...], 0.0).astype(compute_dtype)
        # Layer 2: single-shot matmul, weights resident in VMEM.
        h2 = jnp.dot(h1, w2_ref[...], preferred_element_type=jnp.float32)
        h2 = jnp.maximum(h2 + b2_ref[...], 0.0).astype(compute_dtype)
        # Layer 3: logits.
        out = jnp.dot(h2, w3_ref[...], preferred_element_type=jnp.float32)
        out = out + b3_ref[...]
        o_ref[...] = out.astype(o_ref.dtype)


def vgg16_classifier_pallas(x, params, *, tk=None,
                            compute_dtype=jnp.bfloat16):
    """x: (B, IN); params store W transposed as (in, out). Returns (B, OUT) f32."""
    B, IN = x.shape
    IN2, HIDDEN = params["w1"].shape
    HIDDEN2, OUT = params["w3"].shape
    assert IN == IN2 and HIDDEN == HIDDEN2
    assert HIDDEN % 128 == 0 and OUT % 128 == 0, "keep outputs lane-dense"

    # Big K tile for the streamed W1; full-K (single step) when K is small.
    if tk is None:
        tk = min(IN, 2048)
    tk = min(tk, IN)
    assert IN % tk == 0, "pad in_features to a multiple of tk"
    nk = IN // tk

    # bf16 activations; weights are expected already in compute_dtype (cast
    # once via prepare_params), but cast defensively if not.
    xb = x.astype(compute_dtype)
    w1 = params["w1"].astype(compute_dtype)
    w2 = params["w2"].astype(compute_dtype)
    w3 = params["w3"].astype(compute_dtype)
    b1 = params["b1"].reshape(1, HIDDEN).astype(jnp.float32)
    b2 = params["b2"].reshape(1, HIDDEN).astype(jnp.float32)
    b3 = params["b3"].reshape(1, OUT).astype(jnp.float32)

    bpe = jnp.dtype(compute_dtype).itemsize
    flops = 2 * B * (IN * HIDDEN + HIDDEN * HIDDEN + HIDDEN * OUT)
    bytes_accessed = ((xb.size + w1.size + w2.size + w3.size) * bpe
                      + (b1.size + b2.size + b3.size) * 4 + B * OUT * 4)

    # Deeper buffering on the weight stream only when actually streaming, so
    # the DMA engine never stalls (compute per step is negligible at small B).
    if nk >= 3:
        w1_spec = pl.BlockSpec((tk, HIDDEN), lambda k: (k, 0),
                               pipeline_mode=pl.Buffered(3))
    else:
        w1_spec = pl.BlockSpec((tk, HIDDEN), lambda k: (k, 0))

    kernel = functools.partial(_fused_mlp_kernel, compute_dtype=compute_dtype)

    return pl.pallas_call(
        kernel,
        out_shape=jax.ShapeDtypeStruct((B, OUT), jnp.float32),
        grid_spec=pltpu.PrefetchScalarGridSpec(
            num_scalar_prefetch=0,
            grid=(nk,),
            in_specs=[
                pl.BlockSpec((B, tk), lambda k: (0, k)),           # x slab
                w1_spec,                                           # W1 (streamed)
                pl.BlockSpec((1, HIDDEN), lambda k: (0, 0)),       # b1 (resident)
                pl.BlockSpec((HIDDEN, HIDDEN), lambda k: (0, 0)),  # W2 (resident)
                pl.BlockSpec((1, HIDDEN), lambda k: (0, 0)),       # b2 (resident)
                pl.BlockSpec((HIDDEN, OUT), lambda k: (0, 0)),     # W3 (resident)
                pl.BlockSpec((1, OUT), lambda k: (0, 0)),          # b3 (resident)
            ],
            out_specs=pl.BlockSpec((B, OUT), lambda k: (0, 0)),
            scratch_shapes=[pltpu.VMEM((B, HIDDEN), jnp.float32)],
        ),
        compiler_params=pltpu.CompilerParams(
            dimension_semantics=("arbitrary",),        # K is a reduction axis
            vmem_limit_bytes=48 * 1024 * 1024,         # headroom on v7x (64 MiB VMEM)
        ),
        cost_estimate=pl.CostEstimate(
            flops=flops, transcendentals=0, bytes_accessed=bytes_accessed),
    )(xb, w1, b1, w2, b2, w3, b3)


def prepare_params(params, compute_dtype=jnp.bfloat16):
    """One-time cast of weights to the compute dtype (done OUTSIDE the jitted
    forward so the big W1 is never round-tripped f32->bf16 per call)."""
    return {
        "w1": params["w1"].astype(compute_dtype),
        "w2": params["w2"].astype(compute_dtype),
        "w3": params["w3"].astype(compute_dtype),
        "b1": params["b1"].astype(jnp.float32),
        "b2": params["b2"].astype(jnp.float32),
        "b3": params["b3"].astype(jnp.float32),
    }


def init_vgg16_classifier_params(key, in_features, hidden, out_features,
                                 dtype=jnp.float32):
    """Deterministic synthetic parameters (PyTorch Linear weight is (out,in);
    we store the transpose (in,out) for the kernel)."""
    ks = jax.random.split(key, 6)
    scale = 0.02
    return {
        "w1": jax.random.normal(ks[0], (in_features, hidden), dtype) * scale,
        "b1": jax.random.normal(ks[1], (hidden,), dtype) * scale,
        "w2": jax.random.normal(ks[2], (hidden, hidden), dtype) * scale,
        "b2": jax.random.normal(ks[3], (hidden,), dtype) * scale,
        "w3": jax.random.normal(ks[4], (hidden, out_features), dtype) * scale,
        "b3": jax.random.normal(ks[5], (out_features,), dtype) * scale,
    }


@functools.partial(jax.jit, static_argnames=("tk",))
def vgg16_classifier_forward(x, params, tk=None):
    """Equivalent of VGG16.forward(x) in eval mode."""
    return vgg16_classifier_pallas(x, params, tk=tk)


if __name__ == "__main__":
    # Scaled-down shapes (structure identical to the 25088->4096->4096->out head).
    B, IN_FEATURES, HIDDEN, OUT_FEATURES = 8, 1024, 512, 128

    key = jax.random.PRNGKey(0)
    kx, kp = jax.random.split(key)
    x = jax.random.normal(kx, (B, IN_FEATURES), dtype=jnp.float32)
    params_f32 = init_vgg16_classifier_params(kp, IN_FEATURES, HIDDEN,
                                              OUT_FEATURES)
    params = prepare_params(params_f32)          # one-time bf16 weight cast

    # Full-K single-step reduction (small K) ...
    out = jax.block_until_ready(vgg16_classifier_forward(x, params))
    # ... and the multi-step K-streaming path (what the real 25088-K head uses).
    out_stream = jax.block_until_ready(
        vgg16_classifier_forward(x, params, tk=256))

    assert out.shape == (B, OUT_FEATURES), out.shape
    assert bool(jnp.all(jnp.isfinite(out)))
    assert bool(jnp.allclose(out, out_stream, atol=2e-3, rtol=2e-3))

    # Reference with matching bf16-matmul / f32-accumulate precision.
    bf16 = jnp.bfloat16
    h = jnp.dot(x.astype(bf16), params["w1"],
                preferred_element_type=jnp.float32) + params["b1"]
    h = jnp.maximum(h, 0.0).astype(bf16)
    h = jnp.dot(h, params["w2"],
                preferred_element_type=jnp.float32) + params["b2"]
    h = jnp.maximum(h, 0.0).astype(bf16)
    ref_bf16 = jnp.dot(h, params["w3"],
                       preferred_element_type=jnp.float32) + params["b3"]
    assert bool(jnp.allclose(out, ref_bf16, atol=2e-3, rtol=2e-3))

    # Loose sanity check against the pure-f32 reference (bf16 rounding only).
    ref_f32 = jnp.maximum(x @ params_f32["w1"] + params_f32["b1"], 0.0)
    ref_f32 = jnp.maximum(ref_f32 @ params_f32["w2"] + params_f32["b2"], 0.0)
    ref_f32 = ref_f32 @ params_f32["w3"] + params_f32["b3"]
    assert bool(jnp.allclose(out, ref_f32, atol=1e-2, rtol=1e-1))

    print("KERNEL_OK")
</pallas_src>

<mosaic_0001>
module attributes {stable_mosaic.version = 11 : i64} {
  func.func @_fused_mlp_kernel(%arg0: i32, %arg1: memref<8x1024xbf16, #tpu.memory_space<vmem>>, %arg2: memref<1024x512xbf16, #tpu.memory_space<vmem>>, %arg3: memref<1x512xf32, #tpu.memory_space<vmem>>, %arg4: memref<512x512xbf16, #tpu.memory_space<vmem>>, %arg5: memref<1x512xf32, #tpu.memory_space<vmem>>, %arg6: memref<512x128xbf16, #tpu.memory_space<vmem>>, %arg7: memref<1x128xf32, #tpu.memory_space<vmem>>, %arg8: memref<8x128xf32, #tpu.memory_space<vmem>>, %arg9: memref<8x512xf32, #tpu.memory_space<vmem>>) attributes {dimension_semantics = [#tpu.dimension_semantics<arbitrary>], iteration_bounds = array<i64: 1>, scalar_prefetch = 0 : i64, scratch_operands = 1 : i64, tpu.core_type = #tpu.core_type<tc>, window_params = [{transform_indices = @transform_0, window_bounds = array<i64: 8, 1024>}, {transform_indices = @transform_1, window_bounds = array<i64: 1024, 512>}, {pipeline_mode = #tpu.pipeline_mode<synchronous>, transform_indices = @transform_2, window_bounds = array<i64: 1, 512>}, {pipeline_mode = #tpu.pipeline_mode<synchronous>, transform_indices = @transform_3, window_bounds = array<i64: 512, 512>}, {pipeline_mode = #tpu.pipeline_mode<synchronous>, transform_indices = @transform_4, window_bounds = array<i64: 1, 512>}, {pipeline_mode = #tpu.pipeline_mode<synchronous>, transform_indices = @transform_5, window_bounds = array<i64: 512, 128>}, {pipeline_mode = #tpu.pipeline_mode<synchronous>, transform_indices = @transform_6, window_bounds = array<i64: 1, 128>}, {pipeline_mode = #tpu.pipeline_mode<synchronous>, transform_indices = @transform_7, window_bounds = array<i64: 8, 128>}]} {
    %c0_i32 = arith.constant 0 : i32
    %0 = arith.cmpi eq, %arg0, %c0_i32 : i32
    %1 = arith.extui %0 : i1 to i32
    %c0_i32_0 = arith.constant 0 : i32
    %2 = arith.cmpi ne, %1, %c0_i32_0 : i32
    scf.if %2 {
      %cst_10 = arith.constant 0.000000e+00 : f32
      %12 = vector.broadcast %cst_10 : f32 to vector<8x512xf32>
      %c0_11 = arith.constant 0 : index
      %c0_12 = arith.constant 0 : index
      %13 = vector.load %arg9[%c0_11, %c0_12] : memref<8x512xf32, #tpu.memory_space<vmem>>, vector<8x512xf32>
      tpu.vector_store %arg9[%c0_11, %c0_12], %12 {strides = array<i32>} : memref<8x512xf32, #tpu.memory_space<vmem>>, vector<8x512xf32>,
    } else {
    }
    %c0 = arith.constant 0 : index
    %c0_1 = arith.constant 0 : index
    %3 = vector.load %arg9[%c0, %c0_1] : memref<8x512xf32, #tpu.memory_space<vmem>>, vector<8x512xf32>
    %c0_2 = arith.constant 0 : index
    %c0_3 = arith.constant 0 : index
    %4 = vector.load %arg1[%c0_2, %c0_3] : memref<8x1024xbf16, #tpu.memory_space<vmem>>, vector<8x1024xbf16>
    %c0_4 = arith.constant 0 : index
    %c0_5 = arith.constant 0 : index
    %5 = vector.load %arg2[%c0_4, %c0_5] : memref<1024x512xbf16, #tpu.memory_space<vmem>>, vector<1024x512xbf16>
    %cst = arith.constant dense<0.000000e+00> : vector<8x512xf32>
    %6 = tpu.matmul %4, %5, %cst {dimension_numbers = #tpu.dot_dimension_numbers<[1], [0], [0], [1], [0, 0, 1, 1], [], []>} : vector<8x1024xbf16>, vector<1024x512xbf16>, vector<8x512xf32> -> vector<8x512xf32>
    %7 = arith.addf %3, %6 : vector<8x512xf32>
    %c0_6 = arith.constant 0 : index
    %c0_7 = arith.constant 0 : index
    %8 = vector.load %arg9[%c0_6, %c0_7] : memref<8x512xf32, #tpu.memory_space<vmem>>, vector<8x512xf32>
    tpu.vector_store %arg9[%c0_6, %c0_7], %7 {strides = array<i32>} : memref<8x512xf32, #tpu.memory_space<vmem>>, vector<8x512xf32>,
    %c0_i32_8 = arith.constant 0 : i32
    %9 = arith.cmpi eq, %arg0, %c0_i32_8 : i32
    %10 = arith.extui %9 : i1 to i32
    %c0_i32_9 = arith.constant 0 : i32
    %11 = arith.cmpi ne, %10, %c0_i32_9 : i32
    scf.if %11 {
      %c0_10 = arith.constant 0 : index
      %c0_11 = arith.constant 0 : index
      %12 = vector.load %arg9[%c0_10, %c0_11] : memref<8x512xf32, #tpu.memory_space<vmem>>, vector<8x512xf32>
      %c0_12 = arith.constant 0 : index
      %c0_13 = arith.constant 0 : index
      %13 = vector.load %arg3[%c0_12, %c0_13] : memref<1x512xf32, #tpu.memory_space<vmem>>, vector<1x512xf32>
      %14 = vector.broadcast %13 : vector<1x512xf32> to vector<8x512xf32>
      %15 = arith.addf %12, %14 : vector<8x512xf32>
      %cst_14 = arith.constant 0.000000e+00 : f32
      %16 = vector.broadcast %cst_14 : f32 to vector<8x512xf32>
      %17 = arith.maximumf %15, %16 : vector<8x512xf32>
      %18 = arith.truncf %17 : vector<8x512xf32> to vector<8x512xbf16>
      %c0_15 = arith.constant 0 : index
      %c0_16 = arith.constant 0 : index
      %19 = vector.load %arg4[%c0_15, %c0_16] : memref<512x512xbf16, #tpu.memory_space<vmem>>, vector<512x512xbf16>
      %cst_17 = arith.constant dense<0.000000e+00> : vector<8x512xf32>
      %20 = tpu.matmul %18, %19, %cst_17 {dimension_numbers = #tpu.dot_dimension_numbers<[1], [0], [0], [1], [0, 0, 1, 1], [], []>} : vector<8x512xbf16>, vector<512x512xbf16>, vector<8x512xf32> -> vector<8x512xf32>
      %c0_18 = arith.constant 0 : index
      %c0_19 = arith.constant 0 : index
      %21 = vector.load %arg5[%c0_18, %c0_19] : memref<1x512xf32, #tpu.memory_space<vmem>>, vector<1x512xf32>
      %22 = vector.broadcast %21 : vector<1x512xf32> to vector<8x512xf32>
      %23 = arith.addf %20, %22 : vector<8x512xf32>
      %cst_20 = arith.constant 0.000000e+00 : f32
      %24 = vector.broadcast %cst_20 : f32 to vector<8x512xf32>
      %25 = arith.maximumf %23, %24 : vector<8x512xf32>
      %26 = arith.truncf %25 : vector<8x512xf32> to vector<8x512xbf16>
      %c0_21 = arith.constant 0 : index
      %c0_22 = arith.constant 0 : index
      %27 = vector.load %arg6[%c0_21, %c0_22] : memref<512x128xbf16, #tpu.memory_space<vmem>>, vector<512x128xbf16>
      %cst_23 = arith.constant dense<0.000000e+00> : vector<8x128xf32>
      %28 = tpu.matmul %26, %27, %cst_23 {dimension_numbers = #tpu.dot_dimension_numbers<[1], [0], [0], [1], [0, 0, 1, 1], [], []>} : vector<8x512xbf16>, vector<512x128xbf16>, vector<8x128xf32> -> vector<8x128xf32>
      %c0_24 = arith.constant 0 : index
      %c0_25 = arith.constant 0 : index
      %29 = vector.load %arg7[%c0_24, %c0_25] : memref<1x128xf32, #tpu.memory_space<vmem>>, vector<1x128xf32>
      %30 = vector.broadcast %29 : vector<1x128xf32> to vector<8x128xf32>
      %31 = arith.addf %28, %30 : vector<8x128xf32>
      %c0_26 = arith.constant 0 : index
      %c0_27 = arith.constant 0 : index
      %32 = vector.load %arg8[%c0_26, %c0_27] : memref<8x128xf32, #tpu.memory_space<vmem>>, vector<8x128xf32>
      tpu.vector_store %arg8[%c0_26, %c0_27], %31 {strides = array<i32>} : memref<8x128xf32, #tpu.memory_space<vmem>>, vector<8x128xf32>,
    } else {
    }
    return
  }
  func.func @transform_0(%arg0: i32) -> (i32, i32) {
    %c0_i32 = arith.constant 0 : i32
    %c0_i32_0 = arith.constant 0 : i32
    return %c0_i32, %arg0 : i32, i32
  }
  func.func @transform_1(%arg0: i32) -> (i32, i32) {
    %c0_i32 = arith.constant 0 : i32
    %c0_i32_0 = arith.constant 0 : i32
    return %arg0, %c0_i32 : i32, i32
  }
  func.func @transform_2(%arg0: i32) -> (i32, i32) {
    %c0_i32 = arith.constant 0 : i32
    %c0_i32_0 = arith.constant 0 : i32
    %c0_i32_1 = arith.constant 0 : i32
    return %c0_i32, %c0_i32_0 : i32, i32
  }
  func.func @transform_3(%arg0: i32) -> (i32, i32) {
    %c0_i32 = arith.constant 0 : i32
    %c0_i32_0 = arith.constant 0 : i32
    %c0_i32_1 = arith.constant 0 : i32
    return %c0_i32, %c0_i32_0 : i32, i32
  }
  func.func @transform_4(%arg0: i32) -> (i32, i32) {
    %c0_i32 = arith.constant 0 : i32
    %c0_i32_0 = arith.constant 0 : i32
    %c0_i32_1 = arith.constant 0 : i32
    return %c0_i32, %c0_i32_0 : i32, i32
  }
  func.func @transform_5(%arg0: i32) -> (i32, i32) {
    %c0_i32 = arith.constant 0 : i32
    %c0_i32_0 = arith.constant 0 : i32
    %c0_i32_1 = arith.constant 0 : i32
    return %c0_i32, %c0_i32_0 : i32, i32
  }
  func.func @transform_6(%arg0: i32) -> (i32, i32) {
    %c0_i32 = arith.constant 0 : i32
    %c0_i32_0 = arith.constant 0 : i32
    %c0_i32_1 = arith.constant 0 : i32
    return %c0_i32, %c0_i32_0 : i32, i32
  }
  func.func @transform_7(%arg0: i32) -> (i32, i32) {
    %c0_i32 = arith.constant 0 : i32
    %c0_i32_0 = arith.constant 0 : i32
    %c0_i32_1 = arith.constant 0 : i32
    return %c0_i32, %c0_i32_0 : i32, i32
  }
}

</mosaic_0001>

<llo_original>
// kernel: vgg16_classifier_forward.1
$region0: #{vgg16_classifier_forward.1}
  #allocation0 [shape = 'u32[]', space=smem, size = 0x4, offset = 0x4, fixed_abs, tag = 'smem constant byte address 0x4 - core index']
  #allocation1 [shape = 'u32[72,128]{1,0:T(1,128)}', space=vmem, size = 0x9000, scoped, tag = 'internal scratch']
  #allocation2 [shape = 'f32[8,512]{1,0:T(8,128)}', space=vmem, size = 0x4000, scoped, tag = 'scratch operand']
  %s0 = inlined_call_operand.vmem [shape: bf16[8,1024], index: 0, kind: input, shape index: {}]
  %s1 = inlined_call_operand.hbm [shape: bf16[1024,512], index: 1, kind: input, shape index: {}]
  %s2 = inlined_call_operand.vmem [shape: f32[1,512], index: 2, kind: input, shape index: {}]
  %s3 = inlined_call_operand.hbm [shape: bf16[512,512], index: 3, kind: input, shape index: {}]
  %s4 = inlined_call_operand.vmem [shape: f32[1,512], index: 4, kind: input, shape index: {}]
  %s5 = inlined_call_operand.hbm [shape: bf16[512,128], index: 5, kind: input, shape index: {}]
  %s6 = inlined_call_operand.vmem [shape: f32[1,128], index: 6, kind: input, shape index: {}]
  %s7 = inlined_call_operand.hbm [shape: f32[8,128], index: 7, kind: output, shape index: {}]
  %s8 = sld [smem:[#allocation0]]
  $region58: #{vgg16_classifier_forward.1} parent=0
    _
  %s10 = ssub.s32 1, %s8
  %s11 = scalar_select 0, %s10, %s8
  $region1: #{vgg16_classifier_forward.1} parent=0
    #allocation3 [shape = 'u8[1048576]{0}', space=vmem, size = 0x100000, scoped, tag = 'input window, operand 1, single buffered']
    #allocation4 [shape = 's32[1]{0}', space=sflag, size = 0x4, scoped, tag = 'scoped memory for vgg16_classifier_forward.1']
    #allocation5 [shape = 's32[1]{0}', space=sflag, size = 0x4, scoped, tag = 'scoped memory for vgg16_classifier_forward.1']
    #allocation6 [shape = 'u8[524288]{0}', space=vmem, size = 0x80000, scoped, tag = 'input window, operand 3, single buffered']
    #allocation7 [shape = 's32[1]{0}', space=sflag, size = 0x4, scoped, tag = 'scoped memory for vgg16_classifier_forward.1']
    #allocation8 [shape = 'u8[131072]{0}', space=vmem, size = 0x20000, scoped, tag = 'input window, operand 5, single buffered']
    #allocation9 [shape = 'u8[4096]{0}', space=vmem, size = 0x1000, scoped, tag = 'output window, operand 0, single buffered']
    %12 = vsyncpa [#allocation4], 0
    %13 = vsyncpa [#allocation7], 0
    %14 = vsyncpa [#allocation5], 0
    // Predicated region
    $region2: #{vgg16_classifier_forward.1} parent=1 // pred_check
      _
    $region3: #{vgg16_classifier_forward.1} parent=1 // pred_check_branch
      %16 = sbr.rel (0) target = $region5
    $region4: #{vgg16_classifier_forward.1} parent=1 // pred_region
      _
    $region5: #{vgg16_classifier_forward.1} parent=1 // pred_fallthru
      _
    // Predicated region
    $region6: #{vgg16_classifier_forward.1} parent=1 // pred_check
      _
    $region7: #{vgg16_classifier_forward.1} parent=1 // pred_check_branch
      %18 = sbr.rel (0) target = $region9
    $region8: #{vgg16_classifier_forward.1} parent=1 // pred_region
      %20 = vsyncadd [#allocation4], 0
      %s21 = sshll.u32 %s1, 4
      %s22 = int_to_ptr.hbm [resolvable:$true] %s21
      %s23 = sshll.u32 [#allocation3], 4
      %s24 = int_to_ptr.vmem [resolvable:$true] %s23
      %29 = dma.hbm_to_vmem [thread:$0]  %s22, 32768, %s24, [#allocation4], 256, 256, 16
    $region9: #{vgg16_classifier_forward.1} parent=1 // pred_fallthru
      _
    // Predicated region
    $region10: #{vgg16_classifier_forward.1} parent=1 // pred_check
      _
    $region11: #{vgg16_classifier_forward.1} parent=1 // pred_check_branch
      %31 = sbr.rel (0) target = $region13
    $region12: #{vgg16_classifier_forward.1} parent=1 // pred_region
      _
    $region13: #{vgg16_classifier_forward.1} parent=1 // pred_fallthru
      _
    // Predicated region
    $region14: #{vgg16_classifier_forward.1} parent=1 // pred_check
      _
    $region15: #{vgg16_classifier_forward.1} parent=1 // pred_check_branch
      %33 = sbr.rel (0) target = $region17
    $region16: #{vgg16_classifier_forward.1} parent=1 // pred_region
      %35 = vsyncadd [#allocation7], 0
      %s36 = sshll.u32 %s3, 4
      %s37 = int_to_ptr.hbm [resolvable:$true] %s36
      %s38 = sshll.u32 [#allocation6], 4
      %s39 = int_to_ptr.vmem [resolvable:$true] %s38
      %44 = dma.hbm_to_vmem [thread:$0]  %s37, 16384, %s39, [#allocation7], 256, 256, 16
    $region17: #{vgg16_classifier_forward.1} parent=1 // pred_fallthru
      _
    // Predicated region
    $region18: #{vgg16_classifier_forward.1} parent=1 // pred_check
      _
    $region19: #{vgg16_classifier_forward.1} parent=1 // pred_check_branch
      %46 = sbr.rel (0) target = $region21
    $region20: #{vgg16_classifier_forward.1} parent=1 // pred_region
      _
    $region21: #{vgg16_classifier_forward.1} parent=1 // pred_fallthru
      _
    // Predicated region
    $region22: #{vgg16_classifier_forward.1} parent=1 // pred_check
      _
    $region23: #{vgg16_classifier_forward.1} parent=1 // pred_check_branch
      %48 = sbr.rel (0) target = $region25
    $region24: #{vgg16_classifier_forward.1} parent=1 // pred_region
      %50 = vsyncadd [#allocation7], 0
      %s51 = sshll.u32 %s5, 4
      %s52 = int_to_ptr.hbm [resolvable:$true] %s51
      %s53 = sshll.u32 [#allocation8], 4
      %s54 = int_to_ptr.vmem [resolvable:$true] %s53
      %59 = dma.hbm_to_vmem [thread:$0]  %s52, 4096, %s54, [#allocation7], 64, 64, 4
    $region25: #{vgg16_classifier_forward.1} parent=1 // pred_fallthru
      _
    // Predicated region
    $region26: #{vgg16_classifier_forward.1} parent=1 // pred_check
      _
    $region27: #{vgg16_classifier_forward.1} parent=1 // pred_check_branch
      %61 = sbr.rel (0) target = $region29
    $region28: #{vgg16_classifier_forward.1} parent=1 // pred_region
      _
    $region29: #{vgg16_classifier_forward.1} parent=1 // pred_fallthru
      _
    // Predicated region
    $region30: #{vgg16_classifier_forward.1} parent=1 // pred_check
      _
    $region31: #{vgg16_classifier_forward.1} parent=1 // pred_check_branch
      %63 = sbr.rel (0) target = $region33
    $region32: #{vgg16_classifier_forward.1} parent=1 // pred_region
      %65 = dma.done [#allocation4], 32768
    $region33: #{vgg16_classifier_forward.1} parent=1 // pred_fallthru
      _
    // Predicated region
    $region34: #{vgg16_classifier_forward.1} parent=1 // pred_check
      _
    $region35: #{vgg16_classifier_forward.1} parent=1 // pred_check_branch
      %67 = sbr.rel (0) target = $region37
    $region36: #{vgg16_classifier_forward.1} parent=1 // pred_region
      %69 = dma.done [#allocation7], 16384
    $region37: #{vgg16_classifier_forward.1} parent=1 // pred_fallthru
      _
    // Predicated region
    $region38: #{vgg16_classifier_forward.1} parent=1 // pred_check
      _
    $region39: #{vgg16_classifier_forward.1} parent=1 // pred_check_branch
      %71 = sbr.rel (0) target = $region41
    $region40: #{vgg16_classifier_forward.1} parent=1 // pred_region
      %73 = dma.done [#allocation7], 4096
    $region41: #{vgg16_classifier_forward.1} parent=1 // pred_fallthru
      _
    %p74 = scmp.eq.s32.totalorder 0, 0
    // Predicated region
    $region42: #{vgg16_classifier_forward.1} parent=1 // pred_check
      %p75 = pneg %p74
    $region43: #{vgg16_classifier_forward.1} parent=1 // pred_check_branch
      %77 = sbr.rel (%p75) target = $region45
    $region44: #{vgg16_classifier_forward.1} parent=1 // pred_region
      %78 = vst [vmem:[#allocation2] sm:$0xff] 0.0
      %79 = vst [vmem:[#allocation2 + $0x8] sm:$0xff] 0.0
      %80 = vst [vmem:[#allocation2 + $0x10] sm:$0xff] 0.0
      %81 = vst [vmem:[#allocation2 + $0x18] sm:$0xff] 0.0
    $region45: #{vgg16_classifier_forward.1} parent=1 // pred_fallthru
      _
    %v82 = vld [vmem:[#allocation2] sm:$0xff]
    %v83 = vld [vmem:[#allocation2 + $0x8] sm:$0xff]
    %v84 = vld [vmem:[#allocation2 + $0x10] sm:$0xff]
    %v85 = vld [vmem:[#allocation2 + $0x18] sm:$0xff]
    %v86 = vld [vmem:[%s0] sm:$0xff]
    %v87 = vld [vmem:[%s0 + $0x8] sm:$0xff]
    %v88 = vld [vmem:[%s0 + $0x10] sm:$0xff]
    %v89 = vld [vmem:[%s0 + $0x18] sm:$0xff]
    %v90 = vld [vmem:[#allocation3] sm:$0xff]
    %v91 = vld [vmem:[#allocation3 + $0x8] sm:$0xff]
    %v92 = vld [vmem:[#allocation3 + $0x10] sm:$0xff]
    %v93 = vld [vmem:[#allocation3 + $0x18] sm:$0xff]
    %v94 = vld [vmem:[#allocation3 + $0x20] sm:$0xff]
    %v95 = vld [vmem:[#allocation3 + $0x28] sm:$0xff]
    %v96 = vld [vmem:[#allocation3 + $0x30] sm:$0xff]
    %v97 = vld [vmem:[#allocation3 + $0x38] sm:$0xff]
    %v98 = vld [vmem:[#allocation3 + $0x40] sm:$0xff]
    %v99 = vld [vmem:[#allocation3 + $0x48] sm:$0xff]
    %v100 = vld [vmem:[#allocation3 + $0x50] sm:$0xff]
    %v101 = vld [vmem:[#allocation3 + $0x58] sm:$0xff]
    %v102 = vld [vmem:[#allocation3 + $0x60] sm:$0xff]
    %v103 = vld [vmem:[#allocation3 + $0x68] sm:$0xff]
    %v104 = vld [vmem:[#allocation3 + $0x70] sm:$0xff]
    %v105 = vld [vmem:[#allocation3 + $0x78] sm:$0xff]
    %v106 = vld [vmem:[#allocation3 + $0x80] sm:$0xff]
    %v107 = vld [vmem:[#allocation3 + $0x88] sm:$0xff]
    %v108 = vld [vmem:[#allocation3 + $0x90] sm:$0xff]
    %v109 = vld [vmem:[#allocation3 + $0x98] sm:$0xff]
    %v110 = vld [vmem:[#allocation3 + $0xa0] sm:$0xff]
    %v111 = vld [vmem:[#allocation3 + $0xa8] sm:$0xff]
    %v112 = vld [vmem:[#allocation3 + $0xb0] sm:$0xff]
    %v113 = vld [vmem:[#allocation3 + $0xb8] sm:$0xff]
    %v114 = vld [vmem:[#allocation3 + $0xc0] sm:$0xff]
    %v115 = vld [vmem:[#allocation3 + $0xc8] sm:$0xff]
    %v116 = vld [vmem:[#allocation3 + $0xd0] sm:$0xff]
    %v117 = vld [vmem:[#allocation3 + $0xd8] sm:$0xff]
    %v118 = vld [vmem:[#allocation3 + $0xe0] sm:$0xff]
    %v119 = vld [vmem:[#allocation3 + $0xe8] sm:$0xff]
    %v120 = vld [vmem:[#allocation3 + $0xf0] sm:$0xff]
    %v121 = vld [vmem:[#allocation3 + $0xf8] sm:$0xff]
    %v122 = vld [vmem:[#allocation3 + $0x100] sm:$0xff]
    %v123 = vld [vmem:[#allocation3 + $0x108] sm:$0xff]
    %v124 = vld [vmem:[#allocation3 + $0x110] sm:$0xff]
    %v125 = vld [vmem:[#allocation3 + $0x118] sm:$0xff]
    %v126 = vld [vmem:[#allocation3 + $0x120] sm:$0xff]
    %v127 = vld [vmem:[#allocation3 + $0x128] sm:$0xff]
    %v128 = vld [vmem:[#allocation3 + $0x130] sm:$0xff]
    %v129 = vld [vmem:[#allocation3 + $0x138] sm:$0xff]
    %v130 = vld [vmem:[#allocation3 + $0x140] sm:$0xff]
    %v131 = vld [vmem:[#allocation3 + $0x148] sm:$0xff]
    %v132 = vld [vmem:[#allocation3 + $0x150] sm:$0xff]
    %v133 = vld [vmem:[#allocation3 + $0x158] sm:$0xff]
    %v134 = vld [vmem:[#allocation3 + $0x160] sm:$0xff]
    %v135 = vld [vmem:[#allocation3 + $0x168] sm:$0xff]
    %v136 = vld [vmem:[#allocation3 + $0x170] sm:$0xff]
    %v137 = vld [vmem:[#allocation3 + $0x178] sm:$0xff]
    %v138 = vld [vmem:[#allocation3 + $0x180] sm:$0xff]
    %v139 = vld [vmem:[#allocation3 + $0x188] sm:$0xff]
    %v140 = vld [vmem:[#allocation3 + $0x190] sm:$0xff]
    %v141 = vld [vmem:[#allocation3 + $0x198] sm:$0xff]
    %v142 = vld [vmem:[#allocation3 + $0x1a0] sm:$0xff]
    %v143 = vld [vmem:[#allocation3 + $0x1a8] sm:$0xff]
    %v144 = vld [vmem:[#allocation3 + $0x1b0] sm:$0xff]
    %v145 = vld [vmem:[#allocation3 + $0x1b8] sm:$0xff]
    %v146 = vld [vmem:[#allocation3 + $0x1c0] sm:$0xff]
    %v147 = vld [vmem:[#allocation3 + $0x1c8] sm:$0xff]
    %v148 = vld [vmem:[#allocation3 + $0x1d0] sm:$0xff]
    %v149 = vld [vmem:[#allocation3 + $0x1d8] sm:$0xff]
    %v150 = vld [vmem:[#allocation3 + $0x1e0] sm:$0xff]
    %v151 = vld [vmem:[#allocation3 + $0x1e8] sm:$0xff]
    %v152 = vld [vmem:[#allocation3 + $0x1f0] sm:$0xff]
    %v153 = vld [vmem:[#allocation3 + $0x1f8] sm:$0xff]
    %v154 = vld [vmem:[#allocation3 + $0x200] sm:$0xff]
    %v155 = vld [vmem:[#allocation3 + $0x208] sm:$0xff]
    %v156 = vld [vmem:[#allocation3 + $0x210] sm:$0xff]
    %v157 = vld [vmem:[#allocation3 + $0x218] sm:$0xff]
    %v158 = vld [vmem:[#allocation3 + $0x220] sm:$0xff]
    %v159 = vld [vmem:[#allocation3 + $0x228] sm:$0xff]
    %v160 = vld [vmem:[#allocation3 + $0x230] sm:$0xff]
    %v161 = vld [vmem:[#allocation3 + $0x238] sm:$0xff]
    %v162 = vld [vmem:[#allocation3 + $0x240] sm:$0xff]
    %v163 = vld [vmem:[#allocation3 + $0x248] sm:$0xff]
    %v164 = vld [vmem:[#allocation3 + $0x250] sm:$0xff]
    %v165 = vld [vmem:[#allocation3 + $0x258] sm:$0xff]
    %v166 = vld [vmem:[#allocation3 + $0x260] sm:$0xff]
    %v167 = vld [vmem:[#allocation3 + $0x268] sm:$0xff]
    %v168 = vld [vmem:[#allocation3 + $0x270] sm:$0xff]
    %v169 = vld [vmem:[#allocation3 + $0x278] sm:$0xff]
    %v170 = vld [vmem:[#allocation3 + $0x280] sm:$0xff]
    %v171 = vld [vmem:[#allocation3 + $0x288] sm:$0xff]
    %v172 = vld [vmem:[#allocation3 + $0x290] sm:$0xff]
    %v173 = vld [vmem:[#allocation3 + $0x298] sm:$0xff]
    %v174 = vld [vmem:[#allocation3 + $0x2a0] sm:$0xff]
    %v175 = vld [vmem:[#allocation3 + $0x2a8] sm:$0xff]
    %v176 = vld [vmem:[#allocation3 + $0x2b0] sm:$0xff]
    %v177 = vld [vmem:[#allocation3 + $0x2b8] sm:$0xff]
    %v178 = vld [vmem:[#allocation3 + $0x2c0] sm:$0xff]
    %v179 = vld [vmem:[#allocation3 + $0x2c8] sm:$0xff]
    %v180 = vld [vmem:[#allocation3 + $0x2d0] sm:$0xff]
    %v181 = vld [vmem:[#allocation3 + $0x2d8] sm:$0xff]
    %v182 = vld [vmem:[#allocation3 + $0x2e0] sm:$0xff]
    %v183 = vld [vmem:[#allocation3 + $0x2e8] sm:$0xff]
    %v184 = vld [vmem:[#allocation3 + $0x2f0] sm:$0xff]
    %v185 = vld [vmem:[#allocation3 + $0x2f8] sm:$0xff]
    %v186 = vld [vmem:[#allocation3 + $0x300] sm:$0xff]
    %v187 = vld [vmem:[#allocation3 + $0x308] sm:$0xff]
    %v188 = vld [vmem:[#allocation3 + $0x310] sm:$0xff]
    %v189 = vld [vmem:[#allocation3 + $0x318] sm:$0xff]
    %v190 = vld [vmem:[#allocation3 + $0x320] sm:$0xff]
    %v191 = vld [vmem:[#allocation3 + $0x328] sm:$0xff]
    %v192 = vld [vmem:[#allocation3 + $0x330] sm:$0xff]
    %v193 = vld [vmem:[#allocation3 + $0x338] sm:$0xff]
    %v194 = vld [vmem:[#allocation3 + $0x340] sm:$0xff]
    %v195 = vld [vmem:[#allocation3 + $0x348] sm:$0xff]
    %v196 = vld [vmem:[#allocation3 + $0x350] sm:$0xff]
    %v197 = vld [vmem:[#allocation3 + $0x358] sm:$0xff]
    %v198 = vld [vmem:[#allocation3 + $0x360] sm:$0xff]
    %v199 = vld [vmem:[#allocation3 + $0x368] sm:$0xff]
    %v200 = vld [vmem:[#allocation3 + $0x370] sm:$0xff]
    %v201 = vld [vmem:[#allocation3 + $0x378] sm:$0xff]
    %v202 = vld [vmem:[#allocation3 + $0x380] sm:$0xff]
    %v203 = vld [vmem:[#allocation3 + $0x388] sm:$0xff]
    %v204 = vld [vmem:[#allocation3 + $0x390] sm:$0xff]
    %v205 = vld [vmem:[#allocation3 + $0x398] sm:$0xff]
    %v206 = vld [vmem:[#allocation3 + $0x3a0] sm:$0xff]
    %v207 = vld [vmem:[#allocation3 + $0x3a8] sm:$0xff]
    %v208 = vld [vmem:[#allocation3 + $0x3b0] sm:$0xff]
    %v209 = vld [vmem:[#allocation3 + $0x3b8] sm:$0xff]
    %v210 = vld [vmem:[#allocation3 + $0x3c0] sm:$0xff]
    %v211 = vld [vmem:[#allocation3 + $0x3c8] sm:$0xff]
    %v212 = vld [vmem:[#allocation3 + $0x3d0] sm:$0xff]
    %v213 = vld [vmem:[#allocation3 + $0x3d8] sm:$0xff]
    %v214 = vld [vmem:[#allocation3 + $0x3e0] sm:$0xff]
    %v215 = vld [vmem:[#allocation3 + $0x3e8] sm:$0xff]
    %v216 = vld [vmem:[#allocation3 + $0x3f0] sm:$0xff]
    %v217 = vld [vmem:[#allocation3 + $0x3f8] sm:$0xff]
    %v218 = vld [vmem:[#allocation3 + $0x400] sm:$0xff]
    %v219 = vld [vmem:[#allocation3 + $0x408] sm:$0xff]
    %v220 = vld [vmem:[#allocation3 + $0x410] sm:$0xff]
    %v221 = vld [vmem:[#allocation3 + $0x418] sm:$0xff]
    %v222 = vld [vmem:[#allocation3 + $0x420] sm:$0xff]
    %v223 = vld [vmem:[#allocation3 + $0x428] sm:$0xff]
    %v224 = vld [vmem:[#allocation3 + $0x430] sm:$0xff]
    %v225 = vld [vmem:[#allocation3 + $0x438] sm:$0xff]
    %v226 = vld [vmem:[#allocation3 + $0x440] sm:$0xff]
    %v227 = vld [vmem:[#allocation3 + $0x448] sm:$0xff]
    %v228 = vld [vmem:[#allocation3 + $0x450] sm:$0xff]
    %v229 = vld [vmem:[#allocation3 + $0x458] sm:$0xff]
    %v230 = vld [vmem:[#allocation3 + $0x460] sm:$0xff]
    %v231 = vld [vmem:[#allocation3 + $0x468] sm:$0xff]
    %v232 = vld [vmem:[#allocation3 + $0x470] sm:$0xff]
    %v233 = vld [vmem:[#allocation3 + $0x478] sm:$0xff]
    %v234 = vld [vmem:[#allocation3 + $0x480] sm:$0xff]
    %v235 = vld [vmem:[#allocation3 + $0x488] sm:$0xff]
    %v236 = vld [vmem:[#allocation3 + $0x490] sm:$0xff]
    %v237 = vld [vmem:[#allocation3 + $0x498] sm:$0xff]
    %v238 = vld [vmem:[#allocation3 + $0x4a0] sm:$0xff]
    %v239 = vld [vmem:[#allocation3 + $0x4a8] sm:$0xff]
    %v240 = vld [vmem:[#allocation3 + $0x4b0] sm:$0xff]
    %v241 = vld [vmem:[#allocation3 + $0x4b8] sm:$0xff]
    %v242 = vld [vmem:[#allocation3 + $0x4c0] sm:$0xff]
    %v243 = vld [vmem:[#allocation3 + $0x4c8] sm:$0xff]
    %v244 = vld [vmem:[#allocation3 + $0x4d0] sm:$0xff]
    %v245 = vld [vmem:[#allocation3 + $0x4d8] sm:$0xff]
    %v246 = vld [vmem:[#allocation3 + $0x4e0] sm:$0xff]
    %v247 = vld [vmem:[#allocation3 + $0x4e8] sm:$0xff]
    %v248 = vld [vmem:[#allocation3 + $0x4f0] sm:$0xff]
    %v249 = vld [vmem:[#allocation3 + $0x4f8] sm:$0xff]
    %v250 = vld [vmem:[#allocation3 + $0x500] sm:$0xff]
    %v251 = vld [vmem:[#allocation3 + $0x508] sm:$0xff]
    %v252 = vld [vmem:[#allocation3 + $0x510] sm:$0xff]
    %v253 = vld [vmem:[#allocation3 + $0x518] sm:$0xff]
    %v254 = vld [vmem:[#allocation3 + $0x520] sm:$0xff]
    %v255 = vld [vmem:[#allocation3 + $0x528] sm:$0xff]
    %v256 = vld [vmem:[#allocation3 + $0x530] sm:$0xff]
    %v257 = vld [vmem:[#allocation3 + $0x538] sm:$0xff]
    %v258 = vld [vmem:[#allocation3 + $0x540] sm:$0xff]
    %v259 = vld [vmem:[#allocation3 + $0x548] sm:$0xff]
    %v260 = vld [vmem:[#allocation3 + $0x550] sm:$0xff]
    %v261 = vld [vmem:[#allocation3 + $0x558] sm:$0xff]
    %v262 = vld [vmem:[#allocation3 + $0x560] sm:$0xff]
    %v263 = vld [vmem:[#allocation3 + $0x568] sm:$0xff]
    %v264 = vld [vmem:[#allocation3 + $0x570] sm:$0xff]
    %v265 = vld [vmem:[#allocation3 + $0x578] sm:$0xff]
    %v266 = vld [vmem:[#allocation3 + $0x580] sm:$0xff]
    %v267 = vld [vmem:[#allocation3 + $0x588] sm:$0xff]
    %v268 = vld [vmem:[#allocation3 + $0x590] sm:$0xff]
    %v269 = vld [vmem:[#allocation3 + $0x598] sm:$0xff]
    %v270 = vld [vmem:[#allocation3 + $0x5a0] sm:$0xff]
    %v271 = vld [vmem:[#allocation3 + $0x5a8] sm:$0xff]
    %v272 = vld [vmem:[#allocation3 + $0x5b0] sm:$0xff]
    %v273 = vld [vmem:[#allocation3 + $0x5b8] sm:$0xff]
    %v274 = vld [vmem:[#allocation3 + $0x5c0] sm:$0xff]
    %v275 = vld [vmem:[#allocation3 + $0x5c8] sm:$0xff]
    %v276 = vld [vmem:[#allocation3 + $0x5d0] sm:$0xff]
    %v277 = vld [vmem:[#allocation3 + $0x5d8] sm:$0xff]
    %v278 = vld [vmem:[#allocation3 + $0x5e0] sm:$0xff]
    %v279 = vld [vmem:[#allocation3 + $0x5e8] sm:$0xff]
    %v280 = vld [vmem:[#allocation3 + $0x5f0] sm:$0xff]
    %v281 = vld [vmem:[#allocation3 + $0x5f8] sm:$0xff]
    %v282 = vld [vmem:[#allocation3 + $0x600] sm:$0xff]
    %v283 = vld [vmem:[#allocation3 + $0x608] sm:$0xff]
    %v284 = vld [vmem:[#allocation3 + $0x610] sm:$0xff]
    %v285 = vld [vmem:[#allocation3 + $0x618] sm:$0xff]
    %v286 = vld [vmem:[#allocation3 + $0x620] sm:$0xff]
    %v287 = vld [vmem:[#allocation3 + $0x628] sm:$0xff]
    %v288 = vld [vmem:[#allocation3 + $0x630] sm:$0xff]
    %v289 = vld [vmem:[#allocation3 + $0x638] sm:$0xff]
    %v290 = vld [vmem:[#allocation3 + $0x640] sm:$0xff]
    %v291 = vld [vmem:[#allocation3 + $0x648] sm:$0xff]
    %v292 = vld [vmem:[#allocation3 + $0x650] sm:$0xff]
    %v293 = vld [vmem:[#allocation3 + $0x658] sm:$0xff]
    %v294 = vld [vmem:[#allocation3 + $0x660] sm:$0xff]
    %v295 = vld [vmem:[#allocation3 + $0x668] sm:$0xff]
    %v296 = vld [vmem:[#allocation3 + $0x670] sm:$0xff]
    %v297 = vld [vmem:[#allocation3 + $0x678] sm:$0xff]
    %v298 = vld [vmem:[#allocation3 + $0x680] sm:$0xff]
    %v299 = vld [vmem:[#allocation3 + $0x688] sm:$0xff]
    %v300 = vld [vmem:[#allocation3 + $0x690] sm:$0xff]
    %v301 = vld [vmem:[#allocation3 + $0x698] sm:$0xff]
    %v302 = vld [vmem:[#allocation3 + $0x6a0] sm:$0xff]
    %v303 = vld [vmem:[#allocation3 + $0x6a8] sm:$0xff]
    %v304 = vld [vmem:[#allocation3 + $0x6b0] sm:$0xff]
    %v305 = vld [vmem:[#allocation3 + $0x6b8] sm:$0xff]
    %v306 = vld [vmem:[#allocation3 + $0x6c0] sm:$0xff]
    %v307 = vld [vmem:[#allocation3 + $0x6c8] sm:$0xff]
    %v308 = vld [vmem:[#allocation3 + $0x6d0] sm:$0xff]
    %v309 = vld [vmem:[#allocation3 + $0x6d8] sm:$0xff]
    %v310 = vld [vmem:[#allocation3 + $0x6e0] sm:$0xff]
    %v311 = vld [vmem:[#allocation3 + $0x6e8] sm:$0xff]
    %v312 = vld [vmem:[#allocation3 + $0x6f0] sm:$0xff]
    %v313 = vld [vmem:[#allocation3 + $0x6f8] sm:$0xff]
    %v314 = vld [vmem:[#allocation3 + $0x700] sm:$0xff]
    %v315 = vld [vmem:[#allocation3 + $0x708] sm:$0xff]
    %v316 = vld [vmem:[#allocation3 + $0x710] sm:$0xff]
    %v317 = vld [vmem:[#allocation3 + $0x718] sm:$0xff]
    %v318 = vld [vmem:[#allocation3 + $0x720] sm:$0xff]
    %v319 = vld [vmem:[#allocation3 + $0x728] sm:$0xff]
    %v320 = vld [vmem:[#allocation3 + $0x730] sm:$0xff]
    %v321 = vld [vmem:[#allocation3 + $0x738] sm:$0xff]
    %v322 = vld [vmem:[#allocation3 + $0x740] sm:$0xff]
    %v323 = vld [vmem:[#allocation3 + $0x748] sm:$0xff]
    %v324 = vld [vmem:[#allocation3 + $0x750] sm:$0xff]
    %v325 = vld [vmem:[#allocation3 + $0x758] sm:$0xff]
    %v326 = vld [vmem:[#allocation3 + $0x760] sm:$0xff]
    %v327 = vld [vmem:[#allocation3 + $0x768] sm:$0xff]
    %v328 = vld [vmem:[#allocation3 + $0x770] sm:$0xff]
    %v329 = vld [vmem:[#allocation3 + $0x778] sm:$0xff]
    %v330 = vld [vmem:[#allocation3 + $0x780] sm:$0xff]
    %v331 = vld [vmem:[#allocation3 + $0x788] sm:$0xff]
    %v332 = vld [vmem:[#allocation3 + $0x790] sm:$0xff]
    %v333 = vld [vmem:[#allocation3 + $0x798] sm:$0xff]
    %v334 = vld [vmem:[#allocation3 + $0x7a0] sm:$0xff]
    %v335 = vld [vmem:[#allocation3 + $0x7a8] sm:$0xff]
    %v336 = vld [vmem:[#allocation3 + $0x7b0] sm:$0xff]
    %v337 = vld [vmem:[#allocation3 + $0x7b8] sm:$0xff]
    %v338 = vld [vmem:[#allocation3 + $0x7c0] sm:$0xff]
    %v339 = vld [vmem:[#allocation3 + $0x7c8] sm:$0xff]
    %v340 = vld [vmem:[#allocation3 + $0x7d0] sm:$0xff]
    %v341 = vld [vmem:[#allocation3 + $0x7d8] sm:$0xff]
    %v342 = vld [vmem:[#allocation3 + $0x7e0] sm:$0xff]
    %v343 = vld [vmem:[#allocation3 + $0x7e8] sm:$0xff]
    %v344 = vld [vmem:[#allocation3 + $0x7f0] sm:$0xff]
    %v345 = vld [vmem:[#allocation3 + $0x7f8] sm:$0xff]
    %v350 = vunpack.c.l.b16 %v86
    %v351 = vunpack.c.h.b16 %v86
    %v352 = vunpack.c.l.b16 %v87
    %v353 = vunpack.c.h.b16 %v87
    %v354 = vunpack.c.l.b16 %v88
    %v355 = vunpack.c.h.b16 %v88
    %v356 = vunpack.c.l.b16 %v89
    %v357 = vunpack.c.h.b16 %v89
    %v358 = vpack.c.b16 %v350, %v350
    %v359 = vpack.c.b16 %v351, %v351
    %v360 = vpack.c.b16 %v352, %v352
    %v361 = vpack.c.b16 %v353, %v353
    %v362 = vpack.c.b16 %v354, %v354
    %v363 = vpack.c.b16 %v355, %v355
    %v364 = vpack.c.b16 %v356, %v356
    %v365 = vpack.c.b16 %v357, %v357
    %v630 = vunpack.c.l.b16 %v90
    %v631 = vunpack.c.h.b16 %v90
    %v632 = vunpack.c.l.b16 %v91
    %v633 = vunpack.c.h.b16 %v91
    %v634 = vunpack.c.l.b16 %v92
    %v635 = vunpack.c.h.b16 %v92
    %v636 = vunpack.c.l.b16 %v93
    %v637 = vunpack.c.h.b16 %v93
    %v638 = vunpack.c.l.b16 %v94
    %v639 = vunpack.c.h.b16 %v94
    %v640 = vunpack.c.l.b16 %v95
    %v641 = vunpack.c.h.b16 %v95
    %v642 = vunpack.c.l.b16 %v96
    %v643 = vunpack.c.h.b16 %v96
    %v644 = vunpack.c.l.b16 %v97
    %v645 = vunpack.c.h.b16 %v97
    %v646 = vunpack.c.l.b16 %v98
    %v647 = vunpack.c.h.b16 %v98
    %v648 = vunpack.c.l.b16 %v99
    %v649 = vunpack.c.h.b16 %v99
    %v650 = vunpack.c.l.b16 %v100
    %v651 = vunpack.c.h.b16 %v100
    %v652 = vunpack.c.l.b16 %v101
    %v653 = vunpack.c.h.b16 %v101
    %v654 = vunpack.c.l.b16 %v102
    %v655 = vunpack.c.h.b16 %v102
    %v656 = vunpack.c.l.b16 %v103
    %v657 = vunpack.c.h.b16 %v103
    %v658 = vunpack.c.l.b16 %v104
    %v659 = vunpack.c.h.b16 %v104
    %v660 = vunpack.c.l.b16 %v105
    %v661 = vunpack.c.h.b16 %v105
    %v662 = vunpack.c.l.b16 %v106
    %v663 = vunpack.c.h.b16 %v106
    %v664 = vunpack.c.l.b16 %v107
    %v665 = vunpack.c.h.b16 %v107
    %v666 = vunpack.c.l.b16 %v108
    %v667 = vunpack.c.h.b16 %v108
    %v668 = vunpack.c.l.b16 %v109
    %v669 = vunpack.c.h.b16 %v109
    %v670 = vunpack.c.l.b16 %v110
    %v671 = vunpack.c.h.b16 %v110
    %v672 = vunpack.c.l.b16 %v111
    %v673 = vunpack.c.h.b16 %v111
    %v674 = vunpack.c.l.b16 %v112
    %v675 = vunpack.c.h.b16 %v112
    %v676 = vunpack.c.l.b16 %v113
    %v677 = vunpack.c.h.b16 %v113
    %v678 = vunpack.c.l.b16 %v114
    %v679 = vunpack.c.h.b16 %v114
    %v680 = vunpack.c.l.b16 %v115
    %v681 = vunpack.c.h.b16 %v115
    %v682 = vunpack.c.l.b16 %v116
    %v683 = vunpack.c.h.b16 %v116
    %v684 = vunpack.c.l.b16 %v117
    %v685 = vunpack.c.h.b16 %v117
    %v686 = vunpack.c.l.b16 %v118
    %v687 = vunpack.c.h.b16 %v118
    %v688 = vunpack.c.l.b16 %v119
    %v689 = vunpack.c.h.b16 %v119
    %v690 = vunpack.c.l.b16 %v120
    %v691 = vunpack.c.h.b16 %v120
    %v692 = vunpack.c.l.b16 %v121
    %v693 = vunpack.c.h.b16 %v121
    %v694 = vunpack.c.l.b16 %v122
    %v695 = vunpack.c.h.b16 %v122
    %v696 = vunpack.c.l.b16 %v123
    %v697 = vunpack.c.h.b16 %v123
    %v698 = vunpack.c.l.b16 %v124
    %v699 = vunpack.c.h.b16 %v124
    %v700 = vunpack.c.l.b16 %v125
    %v701 = vunpack.c.h.b16 %v125
    %v702 = vunpack.c.l.b16 %v126
    %v703 = vunpack.c.h.b16 %v126
    %v704 = vunpack.c.l.b16 %v127
    %v705 = vunpack.c.h.b16 %v127
    %v706 = vunpack.c.l.b16 %v128
    %v707 = vunpack.c.h.b16 %v128
    %v708 = vunpack.c.l.b16 %v129
    %v709 = vunpack.c.h.b16 %v129
    %v710 = vunpack.c.l.b16 %v130
    %v711 = vunpack.c.h.b16 %v130
    %v712 = vunpack.c.l.b16 %v131
    %v713 = vunpack.c.h.b16 %v131
    %v714 = vunpack.c.l.b16 %v132
    %v715 = vunpack.c.h.b16 %v132
    %v716 = vunpack.c.l.b16 %v133
    %v717 = vunpack.c.h.b16 %v133
    %v718 = vunpack.c.l.b16 %v134
    %v719 = vunpack.c.h.b16 %v134
    %v720 = vunpack.c.l.b16 %v135
    %v721 = vunpack.c.h.b16 %v135
    %v722 = vunpack.c.l.b16 %v136
    %v723 = vunpack.c.h.b16 %v136
    %v724 = vunpack.c.l.b16 %v137
    %v725 = vunpack.c.h.b16 %v137
    %v726 = vunpack.c.l.b16 %v138
    %v727 = vunpack.c.h.b16 %v138
    %v728 = vunpack.c.l.b16 %v139
    %v729 = vunpack.c.h.b16 %v139
    %v730 = vunpack.c.l.b16 %v140
    %v731 = vunpack.c.h.b16 %v140
    %v732 = vunpack.c.l.b16 %v141
    %v733 = vunpack.c.h.b16 %v141
    %v734 = vunpack.c.l.b16 %v142
    %v735 = vunpack.c.h.b16 %v142
    %v736 = vunpack.c.l.b16 %v143
    %v737 = vunpack.c.h.b16 %v143
    %v738 = vunpack.c.l.b16 %v144
    %v739 = vunpack.c.h.b16 %v144
    %v740 = vunpack.c.l.b16 %v145
    %v741 = vunpack.c.h.b16 %v145
    %v742 = vunpack.c.l.b16 %v146
    %v743 = vunpack.c.h.b16 %v146
    %v744 = vunpack.c.l.b16 %v147
    %v745 = vunpack.c.h.b16 %v147
    %v746 = vunpack.c.l.b16 %v148
    %v747 = vunpack.c.h.b16 %v148
    %v748 = vunpack.c.l.b16 %v149
    %v749 = vunpack.c.h.b16 %v149
    %v750 = vunpack.c.l.b16 %v150
    %v751 = vunpack.c.h.b16 %v150
    %v752 = vunpack.c.l.b16 %v151
    %v753 = vunpack.c.h.b16 %v151
    %v754 = vunpack.c.l.b16 %v152
    %v755 = vunpack.c.h.b16 %v152
    %v756 = vunpack.c.l.b16 %v153
    %v757 = vunpack.c.h.b16 %v153
    %v758 = vunpack.c.l.b16 %v154
    %v759 = vunpack.c.h.b16 %v154
    %v760 = vunpack.c.l.b16 %v155
    %v761 = vunpack.c.h.b16 %v155
    %v762 = vunpack.c.l.b16 %v156
    %v763 = vunpack.c.h.b16 %v156
    %v764 = vunpack.c.l.b16 %v157
    %v765 = vunpack.c.h.b16 %v157
    %v766 = vunpack.c.l.b16 %v158
    %v767 = vunpack.c.h.b16 %v158
    %v768 = vunpack.c.l.b16 %v159
    %v769 = vunpack.c.h.b16 %v159
    %v770 = vunpack.c.l.b16 %v160
    %v771 = vunpack.c.h.b16 %v160
    %v772 = vunpack.c.l.b16 %v161
    %v773 = vunpack.c.h.b16 %v161
    %v774 = vunpack.c.l.b16 %v162
    %v775 = vunpack.c.h.b16 %v162
    %v776 = vunpack.c.l.b16 %v163
    %v777 = vunpack.c.h.b16 %v163
    %v778 = vunpack.c.l.b16 %v164
    %v779 = vunpack.c.h.b16 %v164
    %v780 = vunpack.c.l.b16 %v165
    %v781 = vunpack.c.h.b16 %v165
    %v782 = vunpack.c.l.b16 %v166
    %v783 = vunpack.c.h.b16 %v166
    %v784 = vunpack.c.l.b16 %v167
    %v785 = vunpack.c.h.b16 %v167
    %v786 = vunpack.c.l.b16 %v168
    %v787 = vunpack.c.h.b16 %v168
    %v788 = vunpack.c.l.b16 %v169
    %v789 = vunpack.c.h.b16 %v169
    %v790 = vunpack.c.l.b16 %v170
    %v791 = vunpack.c.h.b16 %v170
    %v792 = vunpack.c.l.b16 %v171
    %v793 = vunpack.c.h.b16 %v171
    %v794 = vunpack.c.l.b16 %v172
    %v795 = vunpack.c.h.b16 %v172
    %v796 = vunpack.c.l.b16 %v173
    %v797 = vunpack.c.h.b16 %v173
    %v798 = vunpack.c.l.b16 %v174
    %v799 = vunpack.c.h.b16 %v174
    %v800 = vunpack.c.l.b16 %v175
    %v801 = vunpack.c.h.b16 %v175
    %v802 = vunpack.c.l.b16 %v176
    %v803 = vunpack.c.h.b16 %v176
    %v804 = vunpack.c.l.b16 %v177
    %v805 = vunpack.c.h.b16 %v177
    %v806 = vunpack.c.l.b16 %v178
    %v807 = vunpack.c.h.b16 %v178
    %v808 = vunpack.c.l.b16 %v179
    %v809 = vunpack.c.h.b16 %v179
    %v810 = vunpack.c.l.b16 %v180
    %v811 = vunpack.c.h.b16 %v180
    %v812 = vunpack.c.l.b16 %v181
    %v813 = vunpack.c.h.b16 %v181
    %v814 = vunpack.c.l.b16 %v182
    %v815 = vunpack.c.h.b16 %v182
    %v816 = vunpack.c.l.b16 %v183
    %v817 = vunpack.c.h.b16 %v183
    %v818 = vunpack.c.l.b16 %v184
    %v819 = vunpack.c.h.b16 %v184
    %v820 = vunpack.c.l.b16 %v185
    %v821 = vunpack.c.h.b16 %v185
    %v822 = vunpack.c.l.b16 %v186
    %v823 = vunpack.c.h.b16 %v186
    %v824 = vunpack.c.l.b16 %v187
    %v825 = vunpack.c.h.b16 %v187
    %v826 = vunpack.c.l.b16 %v188
    %v827 = vunpack.c.h.b16 %v188
    %v828 = vunpack.c.l.b16 %v189
    %v829 = vunpack.c.h.b16 %v189
    %v830 = vunpack.c.l.b16 %v190
    %v831 = vunpack.c.h.b16 %v190
    %v832 = vunpack.c.l.b16 %v191
    %v833 = vunpack.c.h.b16 %v191
    %v834 = vunpack.c.l.b16 %v192
    %v835 = vunpack.c.h.b16 %v192
    %v836 = vunpack.c.l.b16 %v193
    %v837 = vunpack.c.h.b16 %v193
    %v838 = vunpack.c.l.b16 %v194
    %v839 = vunpack.c.h.b16 %v194
    %v840 = vunpack.c.l.b16 %v195
    %v841 = vunpack.c.h.b16 %v195
    %v842 = vunpack.c.l.b16 %v196
    %v843 = vunpack.c.h.b16 %v196
    %v844 = vunpack.c.l.b16 %v197
    %v845 = vunpack.c.h.b16 %v197
    %v846 = vunpack.c.l.b16 %v198
    %v847 = vunpack.c.h.b16 %v198
    %v848 = vunpack.c.l.b16 %v199
    %v849 = vunpack.c.h.b16 %v199
    %v850 = vunpack.c.l.b16 %v200
    %v851 = vunpack.c.h.b16 %v200
    %v852 = vunpack.c.l.b16 %v201
    %v853 = vunpack.c.h.b16 %v201
    %v854 = vunpack.c.l.b16 %v202
    %v855 = vunpack.c.h.b16 %v202
    %v856 = vunpack.c.l.b16 %v203
    %v857 = vunpack.c.h.b16 %v203
    %v858 = vunpack.c.l.b16 %v204
    %v859 = vunpack.c.h.b16 %v204
    %v860 = vunpack.c.l.b16 %v205
    %v861 = vunpack.c.h.b16 %v205
    %v862 = vunpack.c.l.b16 %v206
    %v863 = vunpack.c.h.b16 %v206
    %v864 = vunpack.c.l.b16 %v207
    %v865 = vunpack.c.h.b16 %v207
    %v866 = vunpack.c.l.b16 %v208
    %v867 = vunpack.c.h.b16 %v208
    %v868 = vunpack.c.l.b16 %v209
    %v869 = vunpack.c.h.b16 %v209
    %v870 = vunpack.c.l.b16 %v210
    %v871 = vunpack.c.h.b16 %v210
    %v872 = vunpack.c.l.b16 %v211
    %v873 = vunpack.c.h.b16 %v211
    %v874 = vunpack.c.l.b16 %v212
    %v875 = vunpack.c.h.b16 %v212
    %v876 = vunpack.c.l.b16 %v213
    %v877 = vunpack.c.h.b16 %v213
    %v878 = vunpack.c.l.b16 %v214
    %v879 = vunpack.c.h.b16 %v214
    %v880 = vunpack.c.l.b16 %v215
    %v881 = vunpack.c.h.b16 %v215
    %v882 = vunpack.c.l.b16 %v216
    %v883 = vunpack.c.h.b16 %v216
    %v884 = vunpack.c.l.b16 %v217
    %v885 = vunpack.c.h.b16 %v217
    %v886 = vunpack.c.l.b16 %v218
    %v887 = vunpack.c.h.b16 %v218
    %v888 = vunpack.c.l.b16 %v219
    %v889 = vunpack.c.h.b16 %v219
    %v890 = vunpack.c.l.b16 %v220
    %v891 = vunpack.c.h.b16 %v220
    %v892 = vunpack.c.l.b16 %v221
    %v893 = vunpack.c.h.b16 %v221
    %v894 = vunpack.c.l.b16 %v222
    %v895 = vunpack.c.h.b16 %v222
    %v896 = vunpack.c.l.b16 %v223
    %v897 = vunpack.c.h.b16 %v223
    %v898 = vunpack.c.l.b16 %v224
    %v899 = vunpack.c.h.b16 %v224
    %v900 = vunpack.c.l.b16 %v225
    %v901 = vunpack.c.h.b16 %v225
    %v902 = vunpack.c.l.b16 %v226
    %v903 = vunpack.c.h.b16 %v226
    %v904 = vunpack.c.l.b16 %v227
    %v905 = vunpack.c.h.b16 %v227
    %v906 = vunpack.c.l.b16 %v228
    %v907 = vunpack.c.h.b16 %v228
    %v908 = vunpack.c.l.b16 %v229
    %v909 = vunpack.c.h.b16 %v229
    %v910 = vunpack.c.l.b16 %v230
    %v911 = vunpack.c.h.b16 %v230
    %v912 = vunpack.c.l.b16 %v231
    %v913 = vunpack.c.h.b16 %v231
    %v914 = vunpack.c.l.b16 %v232
    %v915 = vunpack.c.h.b16 %v232
    %v916 = vunpack.c.l.b16 %v233
    %v917 = vunpack.c.h.b16 %v233
    %v918 = vunpack.c.l.b16 %v234
    %v919 = vunpack.c.h.b16 %v234
    %v920 = vunpack.c.l.b16 %v235
    %v921 = vunpack.c.h.b16 %v235
    %v922 = vunpack.c.l.b16 %v236
    %v923 = vunpack.c.h.b16 %v236
    %v924 = vunpack.c.l.b16 %v237
    %v925 = vunpack.c.h.b16 %v237
    %v926 = vunpack.c.l.b16 %v238
    %v927 = vunpack.c.h.b16 %v238
    %v928 = vunpack.c.l.b16 %v239
    %v929 = vunpack.c.h.b16 %v239
    %v930 = vunpack.c.l.b16 %v240
    %v931 = vunpack.c.h.b16 %v240
    %v932 = vunpack.c.l.b16 %v241
    %v933 = vunpack.c.h.b16 %v241
    %v934 = vunpack.c.l.b16 %v242
    %v935 = vunpack.c.h.b16 %v242
    %v936 = vunpack.c.l.b16 %v243
    %v937 = vunpack.c.h.b16 %v243
    %v938 = vunpack.c.l.b16 %v244
    %v939 = vunpack.c.h.b16 %v244
    %v940 = vunpack.c.l.b16 %v245
    %v941 = vunpack.c.h.b16 %v245
    %v942 = vunpack.c.l.b16 %v246
    %v943 = vunpack.c.h.b16 %v246
    %v944 = vunpack.c.l.b16 %v247
    %v945 = vunpack.c.h.b16 %v247
    %v946 = vunpack.c.l.b16 %v248
    %v947 = vunpack.c.h.b16 %v248
    %v948 = vunpack.c.l.b16 %v249
    %v949 = vunpack.c.h.b16 %v249
    %v950 = vunpack.c.l.b16 %v250
    %v951 = vunpack.c.h.b16 %v250
    %v952 = vunpack.c.l.b16 %v251
    %v953 = vunpack.c.h.b16 %v251
    %v954 = vunpack.c.l.b16 %v252
    %v955 = vunpack.c.h.b16 %v252
    %v956 = vunpack.c.l.b16 %v253
    %v957 = vunpack.c.h.b16 %v253
    %v958 = vunpack.c.l.b16 %v254
    %v959 = vunpack.c.h.b16 %v254
    %v960 = vunpack.c.l.b16 %v255
    %v961 = vunpack.c.h.b16 %v255
    %v962 = vunpack.c.l.b16 %v256
    %v963 = vunpack.c.h.b16 %v256
    %v964 = vunpack.c.l.b16 %v257
    %v965 = vunpack.c.h.b16 %v257
    %v966 = vunpack.c.l.b16 %v258
    %v967 = vunpack.c.h.b16 %v258
    %v968 = vunpack.c.l.b16 %v259
    %v969 = vunpack.c.h.b16 %v259
    %v970 = vunpack.c.l.b16 %v260
    %v971 = vunpack.c.h.b16 %v260
    %v972 = vunpack.c.l.b16 %v261
    %v973 = vunpack.c.h.b16 %v261
    %v974 = vunpack.c.l.b16 %v262
    %v975 = vunpack.c.h.b16 %v262
    %v976 = vunpack.c.l.b16 %v263
    %v977 = vunpack.c.h.b16 %v263
    %v978 = vunpack.c.l.b16 %v264
    %v979 = vunpack.c.h.b16 %v264
    %v980 = vunpack.c.l.b16 %v265
    %v981 = vunpack.c.h.b16 %v265
    %v982 = vunpack.c.l.b16 %v266
    %v983 = vunpack.c.h.b16 %v266
    %v984 = vunpack.c.l.b16 %v267
    %v985 = vunpack.c.h.b16 %v267
    %v986 = vunpack.c.l.b16 %v268
    %v987 = vunpack.c.h.b16 %v268
    %v988 = vunpack.c.l.b16 %v269
    %v989 = vunpack.c.h.b16 %v269
    %v990 = vunpack.c.l.b16 %v270
    %v991 = vunpack.c.h.b16 %v270
    %v992 = vunpack.c.l.b16 %v271
    %v993 = vunpack.c.h.b16 %v271
    %v994 = vunpack.c.l.b16 %v272
    %v995 = vunpack.c.h.b16 %v272
    %v996 = vunpack.c.l.b16 %v273
    %v997 = vunpack.c.h.b16 %v273
    %v998 = vunpack.c.l.b16 %v274
    %v999 = vunpack.c.h.b16 %v274
    %v1000 = vunpack.c.l.b16 %v275
    %v1001 = vunpack.c.h.b16 %v275
    %v1002 = vunpack.c.l.b16 %v276
    %v1003 = vunpack.c.h.b16 %v276
    %v1004 = vunpack.c.l.b16 %v277
    %v1005 = vunpack.c.h.b16 %v277
    %v1006 = vunpack.c.l.b16 %v278
    %v1007 = vunpack.c.h.b16 %v278
    %v1008 = vunpack.c.l.b16 %v279
    %v1009 = vunpack.c.h.b16 %v279
    %v1010 = vunpack.c.l.b16 %v280
    %v1011 = vunpack.c.h.b16 %v280
    %v1012 = vunpack.c.l.b16 %v281
    %v1013 = vunpack.c.h.b16 %v281
    %v1014 = vunpack.c.l.b16 %v282
    %v1015 = vunpack.c.h.b16 %v282
    %v1016 = vunpack.c.l.b16 %v283
    %v1017 = vunpack.c.h.b16 %v283
    %v1018 = vunpack.c.l.b16 %v284
    %v1019 = vunpack.c.h.b16 %v284
    %v1020 = vunpack.c.l.b16 %v285
    %v1021 = vunpack.c.h.b16 %v285
    %v1022 = vunpack.c.l.b16 %v286
    %v1023 = vunpack.c.h.b16 %v286
    %v1024 = vunpack.c.l.b16 %v287
    %v1025 = vunpack.c.h.b16 %v287
    %v1026 = vunpack.c.l.b16 %v288
    %v1027 = vunpack.c.h.b16 %v288
    %v1028 = vunpack.c.l.b16 %v289
    %v1029 = vunpack.c.h.b16 %v289
    %v1030 = vunpack.c.l.b16 %v290
    %v1031 = vunpack.c.h.b16 %v290
    %v1032 = vunpack.c.l.b16 %v291
    %v1033 = vunpack.c.h.b16 %v291
    %v1034 = vunpack.c.l.b16 %v292
    %v1035 = vunpack.c.h.b16 %v292
    %v1036 = vunpack.c.l.b16 %v293
    %v1037 = vunpack.c.h.b16 %v293
    %v1038 = vunpack.c.l.b16 %v294
    %v1039 = vunpack.c.h.b16 %v294
    %v1040 = vunpack.c.l.b16 %v295
    %v1041 = vunpack.c.h.b16 %v295
    %v1042 = vunpack.c.l.b16 %v296
    %v1043 = vunpack.c.h.b16 %v296
    %v1044 = vunpack.c.l.b16 %v297
    %v1045 = vunpack.c.h.b16 %v297
    %v1046 = vunpack.c.l.b16 %v298
    %v1047 = vunpack.c.h.b16 %v298
    %v1048 = vunpack.c.l.b16 %v299
    %v1049 = vunpack.c.h.b16 %v299
    %v1050 = vunpack.c.l.b16 %v300
    %v1051 = vunpack.c.h.b16 %v300
    %v1052 = vunpack.c.l.b16 %v301
    %v1053 = vunpack.c.h.b16 %v301
    %v1054 = vunpack.c.l.b16 %v302
    %v1055 = vunpack.c.h.b16 %v302
    %v1056 = vunpack.c.l.b16 %v303
    %v1057 = vunpack.c.h.b16 %v303
    %v1058 = vunpack.c.l.b16 %v304
    %v1059 = vunpack.c.h.b16 %v304
    %v1060 = vunpack.c.l.b16 %v305
    %v1061 = vunpack.c.h.b16 %v305
    %v1062 = vunpack.c.l.b16 %v306
    %v1063 = vunpack.c.h.b16 %v306
    %v1064 = vunpack.c.l.b16 %v307
    %v1065 = vunpack.c.h.b16 %v307
    %v1066 = vunpack.c.l.b16 %v308
    %v1067 = vunpack.c.h.b16 %v308
    %v1068 = vunpack.c.l.b16 %v309
    %v1069 = vunpack.c.h.b16 %v309
    %v1070 = vunpack.c.l.b16 %v310
    %v1071 = vunpack.c.h.b16 %v310
    %v1072 = vunpack.c.l.b16 %v311
    %v1073 = vunpack.c.h.b16 %v311
    %v1074 = vunpack.c.l.b16 %v312
    %v1075 = vunpack.c.h.b16 %v312
    %v1076 = vunpack.c.l.b16 %v313
    %v1077 = vunpack.c.h.b16 %v313
    %v1078 = vunpack.c.l.b16 %v314
    %v1079 = vunpack.c.h.b16 %v314
    %v1080 = vunpack.c.l.b16 %v315
    %v1081 = vunpack.c.h.b16 %v315
    %v1082 = vunpack.c.l.b16 %v316
    %v1083 = vunpack.c.h.b16 %v316
    %v1084 = vunpack.c.l.b16 %v317
    %v1085 = vunpack.c.h.b16 %v317
    %v1086 = vunpack.c.l.b16 %v318
    %v1087 = vunpack.c.h.b16 %v318
    %v1088 = vunpack.c.l.b16 %v319
    %v1089 = vunpack.c.h.b16 %v319
    %v1090 = vunpack.c.l.b16 %v320
    %v1091 = vunpack.c.h.b16 %v320
    %v1092 = vunpack.c.l.b16 %v321
    %v1093 = vunpack.c.h.b16 %v321
    %v1094 = vunpack.c.l.b16 %v322
    %v1095 = vunpack.c.h.b16 %v322
    %v1096 = vunpack.c.l.b16 %v323
    %v1097 = vunpack.c.h.b16 %v323
    %v1098 = vunpack.c.l.b16 %v324
    %v1099 = vunpack.c.h.b16 %v324
    %v1100 = vunpack.c.l.b16 %v325
    %v1101 = vunpack.c.h.b16 %v325
    %v1102 = vunpack.c.l.b16 %v326
    %v1103 = vunpack.c.h.b16 %v326
    %v1104 = vunpack.c.l.b16 %v327
    %v1105 = vunpack.c.h.b16 %v327
    %v1106 = vunpack.c.l.b16 %v328
    %v1107 = vunpack.c.h.b16 %v328
    %v1108 = vunpack.c.l.b16 %v329
    %v1109 = vunpack.c.h.b16 %v329
    %v1110 = vunpack.c.l.b16 %v330
    %v1111 = vunpack.c.h.b16 %v330
    %v1112 = vunpack.c.l.b16 %v331
    %v1113 = vunpack.c.h.b16 %v331
    %v1114 = vunpack.c.l.b16 %v332
    %v1115 = vunpack.c.h.b16 %v332
    %v1116 = vunpack.c.l.b16 %v333
    %v1117 = vunpack.c.h.b16 %v333
    %v1118 = vunpack.c.l.b16 %v334
    %v1119 = vunpack.c.h.b16 %v334
    %v1120 = vunpack.c.l.b16 %v335
    %v1121 = vunpack.c.h.b16 %v335
    %v1122 = vunpack.c.l.b16 %v336
    %v1123 = vunpack.c.h.b16 %v336
    %v1124 = vunpack.c.l.b16 %v337
    %v1125 = vunpack.c.h.b16 %v337
    %v1126 = vunpack.c.l.b16 %v338
    %v1127 = vunpack.c.h.b16 %v338
    %v1128 = vunpack.c.l.b16 %v339
    %v1129 = vunpack.c.h.b16 %v339
    %v1130 = vunpack.c.l.b16 %v340
    %v1131 = vunpack.c.h.b16 %v340
    %v1132 = vunpack.c.l.b16 %v341
    %v1133 = vunpack.c.h.b16 %v341
    %v1134 = vunpack.c.l.b16 %v342
    %v1135 = vunpack.c.h.b16 %v342
    %v1136 = vunpack.c.l.b16 %v343
    %v1137 = vunpack.c.h.b16 %v343
    %v1138 = vunpack.c.l.b16 %v344
    %v1139 = vunpack.c.h.b16 %v344
    %v1140 = vunpack.c.l.b16 %v345
    %v1141 = vunpack.c.h.b16 %v345
    %v1142 = vpack.c.b16 %v634, %v630
    %v1143 = vpack.c.b16 %v635, %v631
    %v1144 = vpack.c.b16 %v636, %v632
    %v1145 = vpack.c.b16 %v637, %v633
    %v1146 = vpack.c.b16 %v642, %v638
    %v1147 = vpack.c.b16 %v643, %v639
    %v1148 = vpack.c.b16 %v644, %v640
    %v1149 = vpack.c.b16 %v645, %v641
    %v1150 = vpack.c.b16 %v650, %v646
    %v1151 = vpack.c.b16 %v651, %v647
    %v1152 = vpack.c.b16 %v652, %v648
    %v1153 = vpack.c.b16 %v653, %v649
    %v1154 = vpack.c.b16 %v658, %v654
    %v1155 = vpack.c.b16 %v659, %v655
    %v1156 = vpack.c.b16 %v660, %v656
    %v1157 = vpack.c.b16 %v661, %v657
    %v1158 = vpack.c.b16 %v666, %v662
    %v1159 = vpack.c.b16 %v667, %v663
    %v1160 = vpack.c.b16 %v668, %v664
    %v1161 = vpack.c.b16 %v669, %v665
    %v1162 = vpack.c.b16 %v674, %v670
    %v1163 = vpack.c.b16 %v675, %v671
    %v1164 = vpack.c.b16 %v676, %v672
    %v1165 = vpack.c.b16 %v677, %v673
    %v1166 = vpack.c.b16 %v682, %v678
    %v1167 = vpack.c.b16 %v683, %v679
    %v1168 = vpack.c.b16 %v684, %v680
    %v1169 = vpack.c.b16 %v685, %v681
    %v1170 = vpack.c.b16 %v690, %v686
    %v1171 = vpack.c.b16 %v691, %v687
    %v1172 = vpack.c.b16 %v692, %v688
    %v1173 = vpack.c.b16 %v693, %v689
    %v1174 = vpack.c.b16 %v698, %v694
    %v1175 = vpack.c.b16 %v699, %v695
    %v1176 = vpack.c.b16 %v700, %v696
    %v1177 = vpack.c.b16 %v701, %v697
    %v1178 = vpack.c.b16 %v706, %v702
    %v1179 = vpack.c.b16 %v707, %v703
    %v1180 = vpack.c.b16 %v708, %v704
    %v1181 = vpack.c.b16 %v709, %v705
    %v1182 = vpack.c.b16 %v714, %v710
    %v1183 = vpack.c.b16 %v715, %v711
    %v1184 = vpack.c.b16 %v716, %v712
    %v1185 = vpack.c.b16 %v717, %v713
    %v1186 = vpack.c.b16 %v722, %v718
    %v1187 = vpack.c.b16 %v723, %v719
    %v1188 = vpack.c.b16 %v724, %v720
    %v1189 = vpack.c.b16 %v725, %v721
    %v1190 = vpack.c.b16 %v730, %v726
    %v1191 = vpack.c.b16 %v731, %v727
    %v1192 = vpack.c.b16 %v732, %v728
    %v1193 = vpack.c.b16 %v733, %v729
    %v1194 = vpack.c.b16 %v738, %v734
    %v1195 = vpack.c.b16 %v739, %v735
    %v1196 = vpack.c.b16 %v740, %v736
    %v1197 = vpack.c.b16 %v741, %v737
    %v1198 = vpack.c.b16 %v746, %v742
    %v1199 = vpack.c.b16 %v747, %v743
    %v1200 = vpack.c.b16 %v748, %v744
    %v1201 = vpack.c.b16 %v749, %v745
    %v1202 = vpack.c.b16 %v754, %v750
    %v1203 = vpack.c.b16 %v755, %v751
    %v1204 = vpack.c.b16 %v756, %v752
    %v1205 = vpack.c.b16 %v757, %v753
    %v1206 = vpack.c.b16 %v762, %v758
    %v1207 = vpack.c.b16 %v763, %v759
    %v1208 = vpack.c.b16 %v764, %v760
    %v1209 = vpack.c.b16 %v765, %v761
    %v1210 = vpack.c.b16 %v770, %v766
    %v1211 = vpack.c.b16 %v771, %v767
    %v1212 = vpack.c.b16 %v772, %v768
    %v1213 = vpack.c.b16 %v773, %v769
    %v1214 = vpack.c.b16 %v778, %v774
    %v1215 = vpack.c.b16 %v779, %v775
    %v1216 = vpack.c.b16 %v780, %v776
    %v1217 = vpack.c.b16 %v781, %v777
    %v1218 = vpack.c.b16 %v786, %v782
    %v1219 = vpack.c.b16 %v787, %v783
    %v1220 = vpack.c.b16 %v788, %v784
    %v1221 = vpack.c.b16 %v789, %v785
    %v1222 = vpack.c.b16 %v794, %v790
    %v1223 = vpack.c.b16 %v795, %v791
    %v1224 = vpack.c.b16 %v796, %v792
    %v1225 = vpack.c.b16 %v797, %v793
    %v1226 = vpack.c.b16 %v802, %v798
    %v1227 = vpack.c.b16 %v803, %v799
    %v1228 = vpack.c.b16 %v804, %v800
    %v1229 = vpack.c.b16 %v805, %v801
    %v1230 = vpack.c.b16 %v810, %v806
    %v1231 = vpack.c.b16 %v811, %v807
    %v1232 = vpack.c.b16 %v812, %v808
    %v1233 = vpack.c.b16 %v813, %v809
    %v1234 = vpack.c.b16 %v818, %v814
    %v1235 = vpack.c.b16 %v819, %v815
    %v1236 = vpack.c.b16 %v820, %v816
    %v1237 = vpack.c.b16 %v821, %v817
    %v1238 = vpack.c.b16 %v826, %v822
    %v1239 = vpack.c.b16 %v827, %v823
    %v1240 = vpack.c.b16 %v828, %v824
    %v1241 = vpack.c.b16 %v829, %v825
    %v1242 = vpack.c.b16 %v834, %v830
    %v1243 = vpack.c.b16 %v835, %v831
    %v1244 = vpack.c.b16 %v836, %v832
    %v1245 = vpack.c.b16 %v837, %v833
    %v1246 = vpack.c.b16 %v842, %v838
    %v1247 = vpack.c.b16 %v843, %v839
    %v1248 = vpack.c.b16 %v844, %v840
    %v1249 = vpack.c.b16 %v845, %v841
    %v1250 = vpack.c.b16 %v850, %v846
    %v1251 = vpack.c.b16 %v851, %v847
    %v1252 = vpack.c.b16 %v852, %v848
    %v1253 = vpack.c.b16 %v853, %v849
    %v1254 = vpack.c.b16 %v858, %v854
    %v1255 = vpack.c.b16 %v859, %v855
    %v1256 = vpack.c.b16 %v860, %v856
    %v1257 = vpack.c.b16 %v861, %v857
    %v1258 = vpack.c.b16 %v866, %v862
    %v1259 = vpack.c.b16 %v867, %v863
    %v1260 = vpack.c.b16 %v868, %v864
    %v1261 = vpack.c.b16 %v869, %v865
    %v1262 = vpack.c.b16 %v874, %v870
    %v1263 = vpack.c.b16 %v875, %v871
    %v1264 = vpack.c.b16 %v876, %v872
    %v1265 = vpack.c.b16 %v877, %v873
    %v1266 = vpack.c.b16 %v882, %v878
    %v1267 = vpack.c.b16 %v883, %v879
    %v1268 = vpack.c.b16 %v884, %v880
    %v1269 = vpack.c.b16 %v885, %v881
    %v1270 = vpack.c.b16 %v890, %v886
    %v1271 = vpack.c.b16 %v891, %v887
    %v1272 = vpack.c.b16 %v892, %v888
    %v1273 = vpack.c.b16 %v893, %v889
    %v1274 = vpack.c.b16 %v898, %v894
    %v1275 = vpack.c.b16 %v899, %v895
    %v1276 = vpack.c.b16 %v900, %v896
    %v1277 = vpack.c.b16 %v901, %v897
    %v1278 = vpack.c.b16 %v906, %v902
    %v1279 = vpack.c.b16 %v907, %v903
    %v1280 = vpack.c.b16 %v908, %v904
    %v1281 = vpack.c.b16 %v909, %v905
    %v1282 = vpack.c.b16 %v914, %v910
    %v1283 = vpack.c.b16 %v915, %v911
    %v1284 = vpack.c.b16 %v916, %v912
    %v1285 = vpack.c.b16 %v917, %v913
    %v1286 = vpack.c.b16 %v922, %v918
    %v1287 = vpack.c.b16 %v923, %v919
    %v1288 = vpack.c.b16 %v924, %v920
    %v1289 = vpack.c.b16 %v925, %v921
    %v1290 = vpack.c.b16 %v930, %v926
    %v1291 = vpack.c.b16 %v931, %v927
    %v1292 = vpack.c.b16 %v932, %v928
    %v1293 = vpack.c.b16 %v933, %v929
    %v1294 = vpack.c.b16 %v938, %v934
    %v1295 = vpack.c.b16 %v939, %v935
    %v1296 = vpack.c.b16 %v940, %v936
    %v1297 = vpack.c.b16 %v941, %v937
    %v1298 = vpack.c.b16 %v946, %v942
    %v1299 = vpack.c.b16 %v947, %v943
    %v1300 = vpack.c.b16 %v948, %v944
    %v1301 = vpack.c.b16 %v949, %v945
    %v1302 = vpack.c.b16 %v954, %v950
    %v1303 = vpack.c.b16 %v955, %v951
    %v1304 = vpack.c.b16 %v956, %v952
    %v1305 = vpack.c.b16 %v957, %v953
    %v1306 = vpack.c.b16 %v962, %v958
    %v1307 = vpack.c.b16 %v963, %v959
    %v1308 = vpack.c.b16 %v964, %v960
    %v1309 = vpack.c.b16 %v965, %v961
    %v1310 = vpack.c.b16 %v970, %v966
    %v1311 = vpack.c.b16 %v971, %v967
    %v1312 = vpack.c.b16 %v972, %v968
    %v1313 = vpack.c.b16 %v973, %v969
    %v1314 = vpack.c.b16 %v978, %v974
    %v1315 = vpack.c.b16 %v979, %v975
    %v1316 = vpack.c.b16 %v980, %v976
    %v1317 = vpack.c.b16 %v981, %v977
    %v1318 = vpack.c.b16 %v986, %v982
    %v1319 = vpack.c.b16 %v987, %v983
    %v1320 = vpack.c.b16 %v988, %v984
    %v1321 = vpack.c.b16 %v989, %v985
    %v1322 = vpack.c.b16 %v994, %v990
    %v1323 = vpack.c.b16 %v995, %v991
    %v1324 = vpack.c.b16 %v996, %v992
    %v1325 = vpack.c.b16 %v997, %v993
    %v1326 = vpack.c.b16 %v1002, %v998
    %v1327 = vpack.c.b16 %v1003, %v999
    %v1328 = vpack.c.b16 %v1004, %v1000
    %v1329 = vpack.c.b16 %v1005, %v1001
    %v1330 = vpack.c.b16 %v1010, %v1006
    %v1331 = vpack.c.b16 %v1011, %v1007
    %v1332 = vpack.c.b16 %v1012, %v1008
    %v1333 = vpack.c.b16 %v1013, %v1009
    %v1334 = vpack.c.b16 %v1018, %v1014
    %v1335 = vpack.c.b16 %v1019, %v1015
    %v1336 = vpack.c.b16 %v1020, %v1016
    %v1337 = vpack.c.b16 %v1021, %v1017
    %v1338 = vpack.c.b16 %v1026, %v1022
    %v1339 = vpack.c.b16 %v1027, %v1023
    %v1340 = vpack.c.b16 %v1028, %v1024
    %v1341 = vpack.c.b16 %v1029, %v1025
    %v1342 = vpack.c.b16 %v1034, %v1030
    %v1343 = vpack.c.b16 %v1035, %v1031
    %v1344 = vpack.c.b16 %v1036, %v1032
    %v1345 = vpack.c.b16 %v1037, %v1033
    %v1346 = vpack.c.b16 %v1042, %v1038
    %v1347 = vpack.c.b16 %v1043, %v1039
    %v1348 = vpack.c.b16 %v1044, %v1040
    %v1349 = vpack.c.b16 %v1045, %v1041
    %v1350 = vpack.c.b16 %v1050, %v1046
    %v1351 = vpack.c.b16 %v1051, %v1047
    %v1352 = vpack.c.b16 %v1052, %v1048
    %v1353 = vpack.c.b16 %v1053, %v1049
    %v1354 = vpack.c.b16 %v1058, %v1054
    %v1355 = vpack.c.b16 %v1059, %v1055
    %v1356 = vpack.c.b16 %v1060, %v1056
    %v1357 = vpack.c.b16 %v1061, %v1057
    %v1358 = vpack.c.b16 %v1066, %v1062
    %v1359 = vpack.c.b16 %v1067, %v1063
    %v1360 = vpack.c.b16 %v1068, %v1064
    %v1361 = vpack.c.b16 %v1069, %v1065
    %v1362 = vpack.c.b16 %v1074, %v1070
    %v1363 = vpack.c.b16 %v1075, %v1071
    %v1364 = vpack.c.b16 %v1076, %v1072
    %v1365 = vpack.c.b16 %v1077, %v1073
    %v1366 = vpack.c.b16 %v1082, %v1078
    %v1367 = vpack.c.b16 %v1083, %v1079
    %v1368 = vpack.c.b16 %v1084, %v1080
    %v1369 = vpack.c.b16 %v1085, %v1081
    %v1370 = vpack.c.b16 %v1090, %v1086
    %v1371 = vpack.c.b16 %v1091, %v1087
    %v1372 = vpack.c.b16 %v1092, %v1088
    %v1373 = vpack.c.b16 %v1093, %v1089
    %v1374 = vpack.c.b16 %v1098, %v1094
    %v1375 = vpack.c.b16 %v1099, %v1095
    %v1376 = vpack.c.b16 %v1100, %v1096
    %v1377 = vpack.c.b16 %v1101, %v1097
    %v1378 = vpack.c.b16 %v1106, %v1102
    %v1379 = vpack.c.b16 %v1107, %v1103
    %v1380 = vpack.c.b16 %v1108, %v1104
    %v1381 = vpack.c.b16 %v1109, %v1105
    %v1382 = vpack.c.b16 %v1114, %v1110
    %v1383 = vpack.c.b16 %v1115, %v1111
    %v1384 = vpack.c.b16 %v1116, %v1112
    %v1385 = vpack.c.b16 %v1117, %v1113
    %v1386 = vpack.c.b16 %v1122, %v1118
    %v1387 = vpack.c.b16 %v1123, %v1119
    %v1388 = vpack.c.b16 %v1124, %v1120
    %v1389 = vpack.c.b16 %v1125, %v1121
    %v1390 = vpack.c.b16 %v1130, %v1126
    %v1391 = vpack.c.b16 %v1131, %v1127
    %v1392 = vpack.c.b16 %v1132, %v1128
    %v1393 = vpack.c.b16 %v1133, %v1129
    %v1394 = vpack.c.b16 %v1138, %v1134
    %v1395 = vpack.c.b16 %v1139, %v1135
    %v1396 = vpack.c.b16 %v1140, %v1136
    %v1397 = vpack.c.b16 %v1141, %v1137
    %1654 = vmatpush.bf16.msra.mxu0 %v1170
    %1655 = vmatpush.bf16.msra.mxu0 %v1166
    %1656 = vmatpush.bf16.msra.mxu0 %v1162
    %1657 = vmatpush.bf16.msra.mxu0 %v1158
    %1658 = vmatpush.bf16.msra.mxu0 %v1154
    %1659 = vmatpush.bf16.msra.mxu0 %v1150
    %1660 = vmatpush.bf16.msra.mxu0 %v1146
    %1661 = vmatpush.bf16.msra.mxu0 %v1142
    %1662 = vmatmul.bf16.gmra.mxu0 %v358
    %v1663 = vpop.f32.mrf.mxu0
    %v1664 = vadd.f32 0.0, %v1663
    %v1665 = vpop.f32.mrf.mxu0
    %1666 = vdwg.mxu0
    %1667 = vmatpush.bf16.msra.mxu0 %v1202
    %1668 = vmatpush.bf16.msra.mxu0 %v1198
    %1669 = vmatpush.bf16.msra.mxu0 %v1194
    %1670 = vmatpush.bf16.msra.mxu0 %v1190
    %1671 = vmatpush.bf16.msra.mxu0 %v1186
    %1672 = vmatpush.bf16.msra.mxu0 %v1182
    %1673 = vmatpush.bf16.msra.mxu0 %v1178
    %1674 = vmatpush.bf16.msra.mxu0 %v1174
    %1675 = vmatmul.bf16.gmra.mxu0 %v359
    %v1676 = vpop.f32.mrf.mxu0
    %v1677 = vadd.f32 %v1664, %v1676
    %v1678 = vpop.f32.mrf.mxu0
    %1679 = vdwg.mxu0
    %1680 = vmatpush.bf16.msra.mxu0 %v1234
    %1681 = vmatpush.bf16.msra.mxu0 %v1230
    %1682 = vmatpush.bf16.msra.mxu0 %v1226
    %1683 = vmatpush.bf16.msra.mxu0 %v1222
    %1684 = vmatpush.bf16.msra.mxu0 %v1218
    %1685 = vmatpush.bf16.msra.mxu0 %v1214
    %1686 = vmatpush.bf16.msra.mxu0 %v1210
    %1687 = vmatpush.bf16.msra.mxu0 %v1206
    %1688 = vmatmul.bf16.gmra.mxu0 %v360
    %v1689 = vpop.f32.mrf.mxu0
    %v1690 = vadd.f32 %v1677, %v1689
    %v1691 = vpop.f32.mrf.mxu0
    %1692 = vdwg.mxu0
    %1693 = vmatpush.bf16.msra.mxu0 %v1266
    %1694 = vmatpush.bf16.msra.mxu0 %v1262
    %1695 = vmatpush.bf16.msra.mxu0 %v1258
    %1696 = vmatpush.bf16.msra.mxu0 %v1254
    %1697 = vmatpush.bf16.msra.mxu0 %v1250
    %1698 = vmatpush.bf16.msra.mxu0 %v1246
    %1699 = vmatpush.bf16.msra.mxu0 %v1242
    %1700 = vmatpush.bf16.msra.mxu0 %v1238
    %1701 = vmatmul.bf16.gmra.mxu0 %v361
    %v1702 = vpop.f32.mrf.mxu0
    %v1703 = vadd.f32 %v1690, %v1702
    %v1704 = vpop.f32.mrf.mxu0
    %1705 = vdwg.mxu0
    %1706 = vmatpush.bf16.msra.mxu0 %v1298
    %1707 = vmatpush.bf16.msra.mxu0 %v1294
    %1708 = vmatpush.bf16.msra.mxu0 %v1290
    %1709 = vmatpush.bf16.msra.mxu0 %v1286
    %1710 = vmatpush.bf16.msra.mxu0 %v1282
    %1711 = vmatpush.bf16.msra.mxu0 %v1278
    %1712 = vmatpush.bf16.msra.mxu0 %v1274
    %1713 = vmatpush.bf16.msra.mxu0 %v1270
    %1714 = vmatmul.bf16.gmra.mxu0 %v362
    %v1715 = vpop.f32.mrf.mxu0
    %v1716 = vadd.f32 %v1703, %v1715
    %v1717 = vpop.f32.mrf.mxu0
    %1718 = vdwg.mxu0
    %1719 = vmatpush.bf16.msra.mxu0 %v1330
    %1720 = vmatpush.bf16.msra.mxu0 %v1326
    %1721 = vmatpush.bf16.msra.mxu0 %v1322
    %1722 = vmatpush.bf16.msra.mxu0 %v1318
    %1723 = vmatpush.bf16.msra.mxu0 %v1314
    %1724 = vmatpush.bf16.msra.mxu0 %v1310
    %1725 = vmatpush.bf16.msra.mxu0 %v1306
    %1726 = vmatpush.bf16.msra.mxu0 %v1302
    %1727 = vmatmul.bf16.gmra.mxu0 %v363
    %v1728 = vpop.f32.mrf.mxu0
    %v1729 = vadd.f32 %v1716, %v1728
    %v1730 = vpop.f32.mrf.mxu0
    %1731 = vdwg.mxu0
    %1732 = vmatpush.bf16.msra.mxu0 %v1362
    %1733 = vmatpush.bf16.msra.mxu0 %v1358
    %1734 = vmatpush.bf16.msra.mxu0 %v1354
    %1735 = vmatpush.bf16.msra.mxu0 %v1350
    %1736 = vmatpush.bf16.msra.mxu0 %v1346
    %1737 = vmatpush.bf16.msra.mxu0 %v1342
    %1738 = vmatpush.bf16.msra.mxu0 %v1338
    %1739 = vmatpush.bf16.msra.mxu0 %v1334
    %1740 = vmatmul.bf16.gmra.mxu0 %v364
    %v1741 = vpop.f32.mrf.mxu0
    %v1742 = vadd.f32 %v1729, %v1741
    %v1743 = vpop.f32.mrf.mxu0
    %1744 = vdwg.mxu0
    %1745 = vmatpush.bf16.msra.mxu0 %v1394
    %1746 = vmatpush.bf16.msra.mxu0 %v1390
    %1747 = vmatpush.bf16.msra.mxu0 %v1386
    %1748 = vmatpush.bf16.msra.mxu0 %v1382
    %1749 = vmatpush.bf16.msra.mxu0 %v1378
    %1750 = vmatpush.bf16.msra.mxu0 %v1374
    %1751 = vmatpush.bf16.msra.mxu0 %v1370
    %1752 = vmatpush.bf16.msra.mxu0 %v1366
    %1753 = vmatmul.bf16.gmra.mxu0 %v365
    %v1754 = vpop.f32.mrf.mxu0
    %v1755 = vadd.f32 %v1742, %v1754
    %v1756 = vpop.f32.mrf.mxu0
    %1757 = vdwg.mxu0
    %1758 = vmatpush.bf16.msra.mxu0 %v1171
    %1759 = vmatpush.bf16.msra.mxu0 %v1167
    %1760 = vmatpush.bf16.msra.mxu0 %v1163
    %1761 = vmatpush.bf16.msra.mxu0 %v1159
    %1762 = vmatpush.bf16.msra.mxu0 %v1155
    %1763 = vmatpush.bf16.msra.mxu0 %v1151
    %1764 = vmatpush.bf16.msra.mxu0 %v1147
    %1765 = vmatpush.bf16.msra.mxu0 %v1143
    %1766 = vmatmul.bf16.gmra.mxu0 %v358
    %v1767 = vpop.f32.mrf.mxu0
    %v1768 = vadd.f32 0.0, %v1767
    %v1769 = vpop.f32.mrf.mxu0
    %1770 = vdwg.mxu0
    %1771 = vmatpush.bf16.msra.mxu0 %v1203
    %1772 = vmatpush.bf16.msra.mxu0 %v1199
    %1773 = vmatpush.bf16.msra.mxu0 %v1195
    %1774 = vmatpush.bf16.msra.mxu0 %v1191
    %1775 = vmatpush.bf16.msra.mxu0 %v1187
    %1776 = vmatpush.bf16.msra.mxu0 %v1183
    %1777 = vmatpush.bf16.msra.mxu0 %v1179
    %1778 = vmatpush.bf16.msra.mxu0 %v1175
    %1779 = vmatmul.bf16.gmra.mxu0 %v359
    %v1780 = vpop.f32.mrf.mxu0
    %v1781 = vadd.f32 %v1768, %v1780
    %v1782 = vpop.f32.mrf.mxu0
    %1783 = vdwg.mxu0
    %1784 = vmatpush.bf16.msra.mxu0 %v1235
    %1785 = vmatpush.bf16.msra.mxu0 %v1231
    %1786 = vmatpush.bf16.msra.mxu0 %v1227
    %1787 = vmatpush.bf16.msra.mxu0 %v1223
    %1788 = vmatpush.bf16.msra.mxu0 %v1219
    %1789 = vmatpush.bf16.msra.mxu0 %v1215
    %1790 = vmatpush.bf16.msra.mxu0 %v1211
    %1791 = vmatpush.bf16.msra.mxu0 %v1207
    %1792 = vmatmul.bf16.gmra.mxu0 %v360
    %v1793 = vpop.f32.mrf.mxu0
    %v1794 = vadd.f32 %v1781, %v1793
    %v1795 = vpop.f32.mrf.mxu0
    %1796 = vdwg.mxu0
    %1797 = vmatpush.bf16.msra.mxu0 %v1267
    %1798 = vmatpush.bf16.msra.mxu0 %v1263
    %1799 = vmatpush.bf16.msra.mxu0 %v1259
    %1800 = vmatpush.bf16.msra.mxu0 %v1255
    %1801 = vmatpush.bf16.msra.mxu0 %v1251
    %1802 = vmatpush.bf16.msra.mxu0 %v1247
    %1803 = vmatpush.bf16.msra.mxu0 %v1243
    %1804 = vmatpush.bf16.msra.mxu0 %v1239
    %1805 = vmatmul.bf16.gmra.mxu0 %v361
    %v1806 = vpop.f32.mrf.mxu0
    %v1807 = vadd.f32 %v1794, %v1806
    %v1808 = vpop.f32.mrf.mxu0
    %1809 = vdwg.mxu0
    %1810 = vmatpush.bf16.msra.mxu0 %v1299
    %1811 = vmatpush.bf16.msra.mxu0 %v1295
    %1812 = vmatpush.bf16.msra.mxu0 %v1291
    %1813 = vmatpush.bf16.msra.mxu0 %v1287
    %1814 = vmatpush.bf16.msra.mxu0 %v1283
    %1815 = vmatpush.bf16.msra.mxu0 %v1279
    %1816 = vmatpush.bf16.msra.mxu0 %v1275
    %1817 = vmatpush.bf16.msra.mxu0 %v1271
    %1818 = vmatmul.bf16.gmra.mxu0 %v362
    %v1819 = vpop.f32.mrf.mxu0
    %v1820 = vadd.f32 %v1807, %v1819
    %v1821 = vpop.f32.mrf.mxu0
    %1822 = vdwg.mxu0
    %1823 = vmatpush.bf16.msra.mxu0 %v1331
    %1824 = vmatpush.bf16.msra.mxu0 %v1327
    %1825 = vmatpush.bf16.msra.mxu0 %v1323
    %1826 = vmatpush.bf16.msra.mxu0 %v1319
    %1827 = vmatpush.bf16.msra.mxu0 %v1315
    %1828 = vmatpush.bf16.msra.mxu0 %v1311
    %1829 = vmatpush.bf16.msra.mxu0 %v1307
    %1830 = vmatpush.bf16.msra.mxu0 %v1303
    %1831 = vmatmul.bf16.gmra.mxu0 %v363
    %v1832 = vpop.f32.mrf.mxu0
    %v1833 = vadd.f32 %v1820, %v1832
    %v1834 = vpop.f32.mrf.mxu0
    %1835 = vdwg.mxu0
    %1836 = vmatpush.bf16.msra.mxu0 %v1363
    %1837 = vmatpush.bf16.msra.mxu0 %v1359
    %1838 = vmatpush.bf16.msra.mxu0 %v1355
    %1839 = vmatpush.bf16.msra.mxu0 %v1351
    %1840 = vmatpush.bf16.msra.mxu0 %v1347
    %1841 = vmatpush.bf16.msra.mxu0 %v1343
    %1842 = vmatpush.bf16.msra.mxu0 %v1339
    %1843 = vmatpush.bf16.msra.mxu0 %v1335
    %1844 = vmatmul.bf16.gmra.mxu0 %v364
    %v1845 = vpop.f32.mrf.mxu0
    %v1846 = vadd.f32 %v1833, %v1845
    %v1847 = vpop.f32.mrf.mxu0
    %1848 = vdwg.mxu0
    %1849 = vmatpush.bf16.msra.mxu0 %v1395
    %1850 = vmatpush.bf16.msra.mxu0 %v1391
    %1851 = vmatpush.bf16.msra.mxu0 %v1387
    %1852 = vmatpush.bf16.msra.mxu0 %v1383
    %1853 = vmatpush.bf16.msra.mxu0 %v1379
    %1854 = vmatpush.bf16.msra.mxu0 %v1375
    %1855 = vmatpush.bf16.msra.mxu0 %v1371
    %1856 = vmatpush.bf16.msra.mxu0 %v1367
    %1857 = vmatmul.bf16.gmra.mxu0 %v365
    %v1858 = vpop.f32.mrf.mxu0
    %v1859 = vadd.f32 %v1846, %v1858
    %v1860 = vpop.f32.mrf.mxu0
    %1861 = vdwg.mxu0
    %1862 = vmatpush.bf16.msra.mxu0 %v1172
    %1863 = vmatpush.bf16.msra.mxu0 %v1168
    %1864 = vmatpush.bf16.msra.mxu0 %v1164
    %1865 = vmatpush.bf16.msra.mxu0 %v1160
    %1866 = vmatpush.bf16.msra.mxu0 %v1156
    %1867 = vmatpush.bf16.msra.mxu0 %v1152
    %1868 = vmatpush.bf16.msra.mxu0 %v1148
    %1869 = vmatpush.bf16.msra.mxu0 %v1144
    %1870 = vmatmul.bf16.gmra.mxu0 %v358
    %v1871 = vpop.f32.mrf.mxu0
    %v1872 = vadd.f32 0.0, %v1871
    %v1873 = vpop.f32.mrf.mxu0
    %1874 = vdwg.mxu0
    %1875 = vmatpush.bf16.msra.mxu0 %v1204
    %1876 = vmatpush.bf16.msra.mxu0 %v1200
    %1877 = vmatpush.bf16.msra.mxu0 %v1196
    %1878 = vmatpush.bf16.msra.mxu0 %v1192
    %1879 = vmatpush.bf16.msra.mxu0 %v1188
    %1880 = vmatpush.bf16.msra.mxu0 %v1184
    %1881 = vmatpush.bf16.msra.mxu0 %v1180
    %1882 = vmatpush.bf16.msra.mxu0 %v1176
    %1883 = vmatmul.bf16.gmra.mxu0 %v359
    %v1884 = vpop.f32.mrf.mxu0
    %v1885 = vadd.f32 %v1872, %v1884
    %v1886 = vpop.f32.mrf.mxu0
    %1887 = vdwg.mxu0
    %1888 = vmatpush.bf16.msra.mxu0 %v1236
    %1889 = vmatpush.bf16.msra.mxu0 %v1232
    %1890 = vmatpush.bf16.msra.mxu0 %v1228
    %1891 = vmatpush.bf16.msra.mxu0 %v1224
    %1892 = vmatpush.bf16.msra.mxu0 %v1220
    %1893 = vmatpush.bf16.msra.mxu0 %v1216
    %1894 = vmatpush.bf16.msra.mxu0 %v1212
    %1895 = vmatpush.bf16.msra.mxu0 %v1208
    %1896 = vmatmul.bf16.gmra.mxu0 %v360
    %v1897 = vpop.f32.mrf.mxu0
    %v1898 = vadd.f32 %v1885, %v1897
    %v1899 = vpop.f32.mrf.mxu0
    %1900 = vdwg.mxu0
    %1901 = vmatpush.bf16.msra.mxu0 %v1268
    %1902 = vmatpush.bf16.msra.mxu0 %v1264
    %1903 = vmatpush.bf16.msra.mxu0 %v1260
    %1904 = vmatpush.bf16.msra.mxu0 %v1256
    %1905 = vmatpush.bf16.msra.mxu0 %v1252
    %1906 = vmatpush.bf16.msra.mxu0 %v1248
    %1907 = vmatpush.bf16.msra.mxu0 %v1244
    %1908 = vmatpush.bf16.msra.mxu0 %v1240
    %1909 = vmatmul.bf16.gmra.mxu0 %v361
    %v1910 = vpop.f32.mrf.mxu0
    %v1911 = vadd.f32 %v1898, %v1910
    %v1912 = vpop.f32.mrf.mxu0
    %1913 = vdwg.mxu0
    %1914 = vmatpush.bf16.msra.mxu0 %v1300
    %1915 = vmatpush.bf16.msra.mxu0 %v1296
    %1916 = vmatpush.bf16.msra.mxu0 %v1292
    %1917 = vmatpush.bf16.msra.mxu0 %v1288
    %1918 = vmatpush.bf16.msra.mxu0 %v1284
    %1919 = vmatpush.bf16.msra.mxu0 %v1280
    %1920 = vmatpush.bf16.msra.mxu0 %v1276
    %1921 = vmatpush.bf16.msra.mxu0 %v1272
    %1922 = vmatmul.bf16.gmra.mxu0 %v362
    %v1923 = vpop.f32.mrf.mxu0
    %v1924 = vadd.f32 %v1911, %v1923
    %v1925 = vpop.f32.mrf.mxu0
    %1926 = vdwg.mxu0
    %1927 = vmatpush.bf16.msra.mxu0 %v1332
    %1928 = vmatpush.bf16.msra.mxu0 %v1328
    %1929 = vmatpush.bf16.msra.mxu0 %v1324
    %1930 = vmatpush.bf16.msra.mxu0 %v1320
    %1931 = vmatpush.bf16.msra.mxu0 %v1316
    %1932 = vmatpush.bf16.msra.mxu0 %v1312
    %1933 = vmatpush.bf16.msra.mxu0 %v1308
    %1934 = vmatpush.bf16.msra.mxu0 %v1304
    %1935 = vmatmul.bf16.gmra.mxu0 %v363
    %v1936 = vpop.f32.mrf.mxu0
    %v1937 = vadd.f32 %v1924, %v1936
    %v1938 = vpop.f32.mrf.mxu0
    %1939 = vdwg.mxu0
    %1940 = vmatpush.bf16.msra.mxu0 %v1364
    %1941 = vmatpush.bf16.msra.mxu0 %v1360
    %1942 = vmatpush.bf16.msra.mxu0 %v1356
    %1943 = vmatpush.bf16.msra.mxu0 %v1352
    %1944 = vmatpush.bf16.msra.mxu0 %v1348
    %1945 = vmatpush.bf16.msra.mxu0 %v1344
    %1946 = vmatpush.bf16.msra.mxu0 %v1340
    %1947 = vmatpush.bf16.msra.mxu0 %v1336
    %1948 = vmatmul.bf16.gmra.mxu0 %v364
    %v1949 = vpop.f32.mrf.mxu0
    %v1950 = vadd.f32 %v1937, %v1949
    %v1951 = vpop.f32.mrf.mxu0
    %1952 = vdwg.mxu0
    %1953 = vmatpush.bf16.msra.mxu0 %v1396
    %1954 = vmatpush.bf16.msra.mxu0 %v1392
    %1955 = vmatpush.bf16.msra.mxu0 %v1388
    %1956 = vmatpush.bf16.msra.mxu0 %v1384
    %1957 = vmatpush.bf16.msra.mxu0 %v1380
    %1958 = vmatpush.bf16.msra.mxu0 %v1376
    %1959 = vmatpush.bf16.msra.mxu0 %v1372
    %1960 = vmatpush.bf16.msra.mxu0 %v1368
    %1961 = vmatmul.bf16.gmra.mxu0 %v365
    %v1962 = vpop.f32.mrf.mxu0
    %v1963 = vadd.f32 %v1950, %v1962
    %v1964 = vpop.f32.mrf.mxu0
    %1965 = vdwg.mxu0
    %1966 = vmatpush.bf16.msra.mxu0 %v1173
    %1967 = vmatpush.bf16.msra.mxu0 %v1169
    %1968 = vmatpush.bf16.msra.mxu0 %v1165
    %1969 = vmatpush.bf16.msra.mxu0 %v1161
    %1970 = vmatpush.bf16.msra.mxu0 %v1157
    %1971 = vmatpush.bf16.msra.mxu0 %v1153
    %1972 = vmatpush.bf16.msra.mxu0 %v1149
    %1973 = vmatpush.bf16.msra.mxu0 %v1145
    %1974 = vmatmul.bf16.gmra.mxu0 %v358
    %v1975 = vpop.f32.mrf.mxu0
    %v1976 = vadd.f32 0.0, %v1975
    %v1977 = vpop.f32.mrf.mxu0
    %1978 = vdwg.mxu0
    %1979 = vmatpush.bf16.msra.mxu0 %v1205
    %1980 = vmatpush.bf16.msra.mxu0 %v1201
    %1981 = vmatpush.bf16.msra.mxu0 %v1197
    %1982 = vmatpush.bf16.msra.mxu0 %v1193
    %1983 = vmatpush.bf16.msra.mxu0 %v1189
    %1984 = vmatpush.bf16.msra.mxu0 %v1185
    %1985 = vmatpush.bf16.msra.mxu0 %v1181
    %1986 = vmatpush.bf16.msra.mxu0 %v1177
    %1987 = vmatmul.bf16.gmra.mxu0 %v359
    %v1988 = vpop.f32.mrf.mxu0
    %v1989 = vadd.f32 %v1976, %v1988
    %v1990 = vpop.f32.mrf.mxu0
    %1991 = vdwg.mxu0
    %1992 = vmatpush.bf16.msra.mxu0 %v1237
    %1993 = vmatpush.bf16.msra.mxu0 %v1233
    %1994 = vmatpush.bf16.msra.mxu0 %v1229
    %1995 = vmatpush.bf16.msra.mxu0 %v1225
    %1996 = vmatpush.bf16.msra.mxu0 %v1221
    %1997 = vmatpush.bf16.msra.mxu0 %v1217
    %1998 = vmatpush.bf16.msra.mxu0 %v1213
    %1999 = vmatpush.bf16.msra.mxu0 %v1209
    %2000 = vmatmul.bf16.gmra.mxu0 %v360
    %v2001 = vpop.f32.mrf.mxu0
    %v2002 = vadd.f32 %v1989, %v2001
    %v2003 = vpop.f32.mrf.mxu0
    %2004 = vdwg.mxu0
    %2005 = vmatpush.bf16.msra.mxu0 %v1269
    %2006 = vmatpush.bf16.msra.mxu0 %v1265
    %2007 = vmatpush.bf16.msra.mxu0 %v1261
    %2008 = vmatpush.bf16.msra.mxu0 %v1257
    %2009 = vmatpush.bf16.msra.mxu0 %v1253
    %2010 = vmatpush.bf16.msra.mxu0 %v1249
    %2011 = vmatpush.bf16.msra.mxu0 %v1245
    %2012 = vmatpush.bf16.msra.mxu0 %v1241
    %2013 = vmatmul.bf16.gmra.mxu0 %v361
    %v2014 = vpop.f32.mrf.mxu0
    %v2015 = vadd.f32 %v2002, %v2014
    %v2016 = vpop.f32.mrf.mxu0
    %2017 = vdwg.mxu0
    %2018 = vmatpush.bf16.msra.mxu0 %v1301
    %2019 = vmatpush.bf16.msra.mxu0 %v1297
    %2020 = vmatpush.bf16.msra.mxu0 %v1293
    %2021 = vmatpush.bf16.msra.mxu0 %v1289
    %2022 = vmatpush.bf16.msra.mxu0 %v1285
    %2023 = vmatpush.bf16.msra.mxu0 %v1281
    %2024 = vmatpush.bf16.msra.mxu0 %v1277
    %2025 = vmatpush.bf16.msra.mxu0 %v1273
    %2026 = vmatmul.bf16.gmra.mxu0 %v362
    %v2027 = vpop.f32.mrf.mxu0
    %v2028 = vadd.f32 %v2015, %v2027
    %v2029 = vpop.f32.mrf.mxu0
    %2030 = vdwg.mxu0
    %2031 = vmatpush.bf16.msra.mxu0 %v1333
    %2032 = vmatpush.bf16.msra.mxu0 %v1329
    %2033 = vmatpush.bf16.msra.mxu0 %v1325
    %2034 = vmatpush.bf16.msra.mxu0 %v1321
    %2035 = vmatpush.bf16.msra.mxu0 %v1317
    %2036 = vmatpush.bf16.msra.mxu0 %v1313
    %2037 = vmatpush.bf16.msra.mxu0 %v1309
    %2038 = vmatpush.bf16.msra.mxu0 %v1305
    %2039 = vmatmul.bf16.gmra.mxu0 %v363
    %v2040 = vpop.f32.mrf.mxu0
    %v2041 = vadd.f32 %v2028, %v2040
    %v2042 = vpop.f32.mrf.mxu0
    %2043 = vdwg.mxu0
    %2044 = vmatpush.bf16.msra.mxu0 %v1365
    %2045 = vmatpush.bf16.msra.mxu0 %v1361
    %2046 = vmatpush.bf16.msra.mxu0 %v1357
    %2047 = vmatpush.bf16.msra.mxu0 %v1353
    %2048 = vmatpush.bf16.msra.mxu0 %v1349
    %2049 = vmatpush.bf16.msra.mxu0 %v1345
    %2050 = vmatpush.bf16.msra.mxu0 %v1341
    %2051 = vmatpush.bf16.msra.mxu0 %v1337
    %2052 = vmatmul.bf16.gmra.mxu0 %v364
    %v2053 = vpop.f32.mrf.mxu0
    %v2054 = vadd.f32 %v2041, %v2053
    %v2055 = vpop.f32.mrf.mxu0
    %2056 = vdwg.mxu0
    %2057 = vmatpush.bf16.msra.mxu0 %v1397
    %2058 = vmatpush.bf16.msra.mxu0 %v1393
    %2059 = vmatpush.bf16.msra.mxu0 %v1389
    %2060 = vmatpush.bf16.msra.mxu0 %v1385
    %2061 = vmatpush.bf16.msra.mxu0 %v1381
    %2062 = vmatpush.bf16.msra.mxu0 %v1377
    %2063 = vmatpush.bf16.msra.mxu0 %v1373
    %2064 = vmatpush.bf16.msra.mxu0 %v1369
    %2065 = vmatmul.bf16.gmra.mxu0 %v365
    %v2066 = vpop.f32.mrf.mxu0
    %v2067 = vadd.f32 %v2054, %v2066
    %v2068 = vpop.f32.mrf.mxu0
    %2069 = vdwg.mxu0
    %v2070 = vadd.f32 %v82, %v1755
    %v2071 = vadd.f32 %v83, %v1859
    %v2072 = vadd.f32 %v84, %v1963
    %v2073 = vadd.f32 %v85, %v2067
    %2074 = vst [vmem:[#allocation2] sm:$0xff] %v2070
    %2075 = vst [vmem:[#allocation2 + $0x8] sm:$0xff] %v2071
    %2076 = vst [vmem:[#allocation2 + $0x10] sm:$0xff] %v2072
    %2077 = vst [vmem:[#allocation2 + $0x18] sm:$0xff] %v2073
    // Predicated region
    $region46: #{vgg16_classifier_forward.1} parent=1 // pred_check
      %p2078 = pneg %p74
    $region47: #{vgg16_classifier_forward.1} parent=1 // pred_check_branch
      %2080 = sbr.rel (%p2078) target = $region49
    $region48: #{vgg16_classifier_forward.1} parent=1 // pred_region
      %v2081 = vld [vmem:[#allocation2] sm:$0xff]
      %v2082 = vld [vmem:[#allocation2 + $0x8] sm:$0xff]
      %v2083 = vld [vmem:[#allocation2 + $0x10] sm:$0xff]
      %v2084 = vld [vmem:[#allocation2 + $0x18] sm:$0xff]
      %v2085 = vld [vmem:[%s2] sm:$0xf]
      %v2087 = vperm.slane %v2085, 0
      %v2088 = vperm.slane %v2085, 1
      %v2089 = vperm.slane %v2085, 2
      %v2090 = vperm.slane %v2085, 3
      %v2095 = vadd.f32 %v2081, %v2087
      %v2096 = vadd.f32 %v2082, %v2088
      %v2097 = vadd.f32 %v2083, %v2089
      %v2098 = vadd.f32 %v2084, %v2090
      %v2099 = vmax.f32 %v2095, 0.0
      %v2100 = vmax.f32 %v2096, 0.0
      %v2101 = vmax.f32 %v2097, 0.0
      %v2102 = vmax.f32 %v2098, 0.0
      %v2103 = vpack.c.bf16 %v2099, %v2099
      %v2104 = vpack.c.bf16 %v2100, %v2100
      %v2105 = vpack.c.bf16 %v2101, %v2101
      %v2106 = vpack.c.bf16 %v2102, %v2102
      %v2107 = vld [vmem:[#allocation6] sm:$0xff]
      %v2108 = vld [vmem:[#allocation6 + $0x8] sm:$0xff]
      %v2109 = vld [vmem:[#allocation6 + $0x10] sm:$0xff]
      %v2110 = vld [vmem:[#allocation6 + $0x18] sm:$0xff]
      %v2111 = vld [vmem:[#allocation6 + $0x20] sm:$0xff]
      %v2112 = vld [vmem:[#allocation6 + $0x28] sm:$0xff]
      %v2113 = vld [vmem:[#allocation6 + $0x30] sm:$0xff]
      %v2114 = vld [vmem:[#allocation6 + $0x38] sm:$0xff]
      %v2115 = vld [vmem:[#allocation6 + $0x40] sm:$0xff]
      %v2116 = vld [vmem:[#allocation6 + $0x48] sm:$0xff]
      %v2117 = vld [vmem:[#allocation6 + $0x50] sm:$0xff]
      %v2118 = vld [vmem:[#allocation6 + $0x58] sm:$0xff]
      %v2119 = vld [vmem:[#allocation6 + $0x60] sm:$0xff]
      %v2120 = vld [vmem:[#allocation6 + $0x68] sm:$0xff]
      %v2121 = vld [vmem:[#allocation6 + $0x70] sm:$0xff]
      %v2122 = vld [vmem:[#allocation6 + $0x78] sm:$0xff]
      %v2123 = vld [vmem:[#allocation6 + $0x80] sm:$0xff]
      %v2124 = vld [vmem:[#allocation6 + $0x88] sm:$0xff]
      %v2125 = vld [vmem:[#allocation6 + $0x90] sm:$0xff]
      %v2126 = vld [vmem:[#allocation6 + $0x98] sm:$0xff]
      %v2127 = vld [vmem:[#allocation6 + $0xa0] sm:$0xff]
      %v2128 = vld [vmem:[#allocation6 + $0xa8] sm:$0xff]
      %v2129 = vld [vmem:[#allocation6 + $0xb0] sm:$0xff]
      %v2130 = vld [vmem:[#allocation6 + $0xb8] sm:$0xff]
      %v2131 = vld [vmem:[#allocation6 + $0xc0] sm:$0xff]
      %v2132 = vld [vmem:[#allocation6 + $0xc8] sm:$0xff]
      %v2133 = vld [vmem:[#allocation6 + $0xd0] sm:$0xff]
      %v2134 = vld [vmem:[#allocation6 + $0xd8] sm:$0xff]
      %v2135 = vld [vmem:[#allocation6 + $0xe0] sm:$0xff]
      %v2136 = vld [vmem:[#allocation6 + $0xe8] sm:$0xff]
      %v2137 = vld [vmem:[#allocation6 + $0xf0] sm:$0xff]
      %v2138 = vld [vmem:[#allocation6 + $0xf8] sm:$0xff]
      %v2139 = vld [vmem:[#allocation6 + $0x100] sm:$0xff]
      %v2140 = vld [vmem:[#allocation6 + $0x108] sm:$0xff]
      %v2141 = vld [vmem:[#allocation6 + $0x110] sm:$0xff]
      %v2142 = vld [vmem:[#allocation6 + $0x118] sm:$0xff]
      %v2143 = vld [vmem:[#allocation6 + $0x120] sm:$0xff]
      %v2144 = vld [vmem:[#allocation6 + $0x128] sm:$0xff]
      %v2145 = vld [vmem:[#allocation6 + $0x130] sm:$0xff]
      %v2146 = vld [vmem:[#allocation6 + $0x138] sm:$0xff]
      %v2147 = vld [vmem:[#allocation6 + $0x140] sm:$0xff]
      %v2148 = vld [vmem:[#allocation6 + $0x148] sm:$0xff]
      %v2149 = vld [vmem:[#allocation6 + $0x150] sm:$0xff]
      %v2150 = vld [vmem:[#allocation6 + $0x158] sm:$0xff]
      %v2151 = vld [vmem:[#allocation6 + $0x160] sm:$0xff]
      %v2152 = vld [vmem:[#allocation6 + $0x168] sm:$0xff]
      %v2153 = vld [vmem:[#allocation6 + $0x170] sm:$0xff]
      %v2154 = vld [vmem:[#allocation6 + $0x178] sm:$0xff]
      %v2155 = vld [vmem:[#allocation6 + $0x180] sm:$0xff]
      %v2156 = vld [vmem:[#allocation6 + $0x188] sm:$0xff]
      %v2157 = vld [vmem:[#allocation6 + $0x190] sm:$0xff]
      %v2158 = vld [vmem:[#allocation6 + $0x198] sm:$0xff]
      %v2159 = vld [vmem:[#allocation6 + $0x1a0] sm:$0xff]
      %v2160 = vld [vmem:[#allocation6 + $0x1a8] sm:$0xff]
      %v2161 = vld [vmem:[#allocation6 + $0x1b0] sm:$0xff]
      %v2162 = vld [vmem:[#allocation6 + $0x1b8] sm:$0xff]
      %v2163 = vld [vmem:[#allocation6 + $0x1c0] sm:$0xff]
      %v2164 = vld [vmem:[#allocation6 + $0x1c8] sm:$0xff]
      %v2165 = vld [vmem:[#allocation6 + $0x1d0] sm:$0xff]
      %v2166 = vld [vmem:[#allocation6 + $0x1d8] sm:$0xff]
      %v2167 = vld [vmem:[#allocation6 + $0x1e0] sm:$0xff]
      %v2168 = vld [vmem:[#allocation6 + $0x1e8] sm:$0xff]
      %v2169 = vld [vmem:[#allocation6 + $0x1f0] sm:$0xff]
      %v2170 = vld [vmem:[#allocation6 + $0x1f8] sm:$0xff]
      %v2171 = vld [vmem:[#allocation6 + $0x200] sm:$0xff]
      %v2172 = vld [vmem:[#allocation6 + $0x208] sm:$0xff]
      %v2173 = vld [vmem:[#allocation6 + $0x210] sm:$0xff]
      %v2174 = vld [vmem:[#allocation6 + $0x218] sm:$0xff]
      %v2175 = vld [vmem:[#allocation6 + $0x220] sm:$0xff]
      %v2176 = vld [vmem:[#allocation6 + $0x228] sm:$0xff]
      %v2177 = vld [vmem:[#allocation6 + $0x230] sm:$0xff]
      %v2178 = vld [vmem:[#allocation6 + $0x238] sm:$0xff]
      %v2179 = vld [vmem:[#allocation6 + $0x240] sm:$0xff]
      %v2180 = vld [vmem:[#allocation6 + $0x248] sm:$0xff]
      %v2181 = vld [vmem:[#allocation6 + $0x250] sm:$0xff]
      %v2182 = vld [vmem:[#allocation6 + $0x258] sm:$0xff]
      %v2183 = vld [vmem:[#allocation6 + $0x260] sm:$0xff]
      %v2184 = vld [vmem:[#allocation6 + $0x268] sm:$0xff]
      %v2185 = vld [vmem:[#allocation6 + $0x270] sm:$0xff]
      %v2186 = vld [vmem:[#allocation6 + $0x278] sm:$0xff]
      %v2187 = vld [vmem:[#allocation6 + $0x280] sm:$0xff]
      %v2188 = vld [vmem:[#allocation6 + $0x288] sm:$0xff]
      %v2189 = vld [vmem:[#allocation6 + $0x290] sm:$0xff]
      %v2190 = vld [vmem:[#allocation6 + $0x298] sm:$0xff]
      %v2191 = vld [vmem:[#allocation6 + $0x2a0] sm:$0xff]
      %v2192 = vld [vmem:[#allocation6 + $0x2a8] sm:$0xff]
      %v2193 = vld [vmem:[#allocation6 + $0x2b0] sm:$0xff]
      %v2194 = vld [vmem:[#allocation6 + $0x2b8] sm:$0xff]
      %v2195 = vld [vmem:[#allocation6 + $0x2c0] sm:$0xff]
      %v2196 = vld [vmem:[#allocation6 + $0x2c8] sm:$0xff]
      %v2197 = vld [vmem:[#allocation6 + $0x2d0] sm:$0xff]
      %v2198 = vld [vmem:[#allocation6 + $0x2d8] sm:$0xff]
      %v2199 = vld [vmem:[#allocation6 + $0x2e0] sm:$0xff]
      %v2200 = vld [vmem:[#allocation6 + $0x2e8] sm:$0xff]
      %v2201 = vld [vmem:[#allocation6 + $0x2f0] sm:$0xff]
      %v2202 = vld [vmem:[#allocation6 + $0x2f8] sm:$0xff]
      %v2203 = vld [vmem:[#allocation6 + $0x300] sm:$0xff]
      %v2204 = vld [vmem:[#allocation6 + $0x308] sm:$0xff]
      %v2205 = vld [vmem:[#allocation6 + $0x310] sm:$0xff]
      %v2206 = vld [vmem:[#allocation6 + $0x318] sm:$0xff]
      %v2207 = vld [vmem:[#allocation6 + $0x320] sm:$0xff]
      %v2208 = vld [vmem:[#allocation6 + $0x328] sm:$0xff]
      %v2209 = vld [vmem:[#allocation6 + $0x330] sm:$0xff]
      %v2210 = vld [vmem:[#allocation6 + $0x338] sm:$0xff]
      %v2211 = vld [vmem:[#allocation6 + $0x340] sm:$0xff]
      %v2212 = vld [vmem:[#allocation6 + $0x348] sm:$0xff]
      %v2213 = vld [vmem:[#allocation6 + $0x350] sm:$0xff]
      %v2214 = vld [vmem:[#allocation6 + $0x358] sm:$0xff]
      %v2215 = vld [vmem:[#allocation6 + $0x360] sm:$0xff]
      %v2216 = vld [vmem:[#allocation6 + $0x368] sm:$0xff]
      %v2217 = vld [vmem:[#allocation6 + $0x370] sm:$0xff]
      %v2218 = vld [vmem:[#allocation6 + $0x378] sm:$0xff]
      %v2219 = vld [vmem:[#allocation6 + $0x380] sm:$0xff]
      %v2220 = vld [vmem:[#allocation6 + $0x388] sm:$0xff]
      %v2221 = vld [vmem:[#allocation6 + $0x390] sm:$0xff]
      %v2222 = vld [vmem:[#allocation6 + $0x398] sm:$0xff]
      %v2223 = vld [vmem:[#allocation6 + $0x3a0] sm:$0xff]
      %v2224 = vld [vmem:[#allocation6 + $0x3a8] sm:$0xff]
      %v2225 = vld [vmem:[#allocation6 + $0x3b0] sm:$0xff]
      %v2226 = vld [vmem:[#allocation6 + $0x3b8] sm:$0xff]
      %v2227 = vld [vmem:[#allocation6 + $0x3c0] sm:$0xff]
      %v2228 = vld [vmem:[#allocation6 + $0x3c8] sm:$0xff]
      %v2229 = vld [vmem:[#allocation6 + $0x3d0] sm:$0xff]
      %v2230 = vld [vmem:[#allocation6 + $0x3d8] sm:$0xff]
      %v2231 = vld [vmem:[#allocation6 + $0x3e0] sm:$0xff]
      %v2232 = vld [vmem:[#allocation6 + $0x3e8] sm:$0xff]
      %v2233 = vld [vmem:[#allocation6 + $0x3f0] sm:$0xff]
      %v2234 = vld [vmem:[#allocation6 + $0x3f8] sm:$0xff]
      %v2235 = vld [vmem:[%s4] sm:$0xf]
      %v2237 = vperm.slane %v2235, 0
      %v2238 = vperm.slane %v2235, 1
      %v2239 = vperm.slane %v2235, 2
      %v2240 = vperm.slane %v2235, 3
      %v2373 = vunpack.c.l.b16 %v2107
      %v2374 = vunpack.c.h.b16 %v2107
      %v2375 = vunpack.c.l.b16 %v2108
      %v2376 = vunpack.c.h.b16 %v2108
      %v2377 = vunpack.c.l.b16 %v2109
      %v2378 = vunpack.c.h.b16 %v2109
      %v2379 = vunpack.c.l.b16 %v2110
      %v2380 = vunpack.c.h.b16 %v2110
      %v2381 = vunpack.c.l.b16 %v2111
      %v2382 = vunpack.c.h.b16 %v2111
      %v2383 = vunpack.c.l.b16 %v2112
      %v2384 = vunpack.c.h.b16 %v2112
      %v2385 = vunpack.c.l.b16 %v2113
      %v2386 = vunpack.c.h.b16 %v2113
      %v2387 = vunpack.c.l.b16 %v2114
      %v2388 = vunpack.c.h.b16 %v2114
      %v2389 = vunpack.c.l.b16 %v2115
      %v2390 = vunpack.c.h.b16 %v2115
      %v2391 = vunpack.c.l.b16 %v2116
      %v2392 = vunpack.c.h.b16 %v2116
      %v2393 = vunpack.c.l.b16 %v2117
      %v2394 = vunpack.c.h.b16 %v2117
      %v2395 = vunpack.c.l.b16 %v2118
      %v2396 = vunpack.c.h.b16 %v2118
      %v2397 = vunpack.c.l.b16 %v2119
      %v2398 = vunpack.c.h.b16 %v2119
      %v2399 = vunpack.c.l.b16 %v2120
      %v2400 = vunpack.c.h.b16 %v2120
      %v2401 = vunpack.c.l.b16 %v2121
      %v2402 = vunpack.c.h.b16 %v2121
      %v2403 = vunpack.c.l.b16 %v2122
      %v2404 = vunpack.c.h.b16 %v2122
      %v2405 = vunpack.c.l.b16 %v2123
      %v2406 = vunpack.c.h.b16 %v2123
      %v2407 = vunpack.c.l.b16 %v2124
      %v2408 = vunpack.c.h.b16 %v2124
      %v2409 = vunpack.c.l.b16 %v2125
      %v2410 = vunpack.c.h.b16 %v2125
      %v2411 = vunpack.c.l.b16 %v2126
      %v2412 = vunpack.c.h.b16 %v2126
      %v2413 = vunpack.c.l.b16 %v2127
      %v2414 = vunpack.c.h.b16 %v2127
      %v2415 = vunpack.c.l.b16 %v2128
      %v2416 = vunpack.c.h.b16 %v2128
      %v2417 = vunpack.c.l.b16 %v2129
      %v2418 = vunpack.c.h.b16 %v2129
      %v2419 = vunpack.c.l.b16 %v2130
      %v2420 = vunpack.c.h.b16 %v2130
      %v2421 = vunpack.c.l.b16 %v2131
      %v2422 = vunpack.c.h.b16 %v2131
      %v2423 = vunpack.c.l.b16 %v2132
      %v2424 = vunpack.c.h.b16 %v2132
      %v2425 = vunpack.c.l.b16 %v2133
      %v2426 = vunpack.c.h.b16 %v2133
      %v2427 = vunpack.c.l.b16 %v2134
      %v2428 = vunpack.c.h.b16 %v2134
      %v2429 = vunpack.c.l.b16 %v2135
      %v2430 = vunpack.c.h.b16 %v2135
      %v2431 = vunpack.c.l.b16 %v2136
      %v2432 = vunpack.c.h.b16 %v2136
      %v2433 = vunpack.c.l.b16 %v2137
      %v2434 = vunpack.c.h.b16 %v2137
      %v2435 = vunpack.c.l.b16 %v2138
      %v2436 = vunpack.c.h.b16 %v2138
      %v2437 = vunpack.c.l.b16 %v2139
      %v2438 = vunpack.c.h.b16 %v2139
      %v2439 = vunpack.c.l.b16 %v2140
      %v2440 = vunpack.c.h.b16 %v2140
      %v2441 = vunpack.c.l.b16 %v2141
      %v2442 = vunpack.c.h.b16 %v2141
      %v2443 = vunpack.c.l.b16 %v2142
      %v2444 = vunpack.c.h.b16 %v2142
      %v2445 = vunpack.c.l.b16 %v2143
      %v2446 = vunpack.c.h.b16 %v2143
      %v2447 = vunpack.c.l.b16 %v2144
      %v2448 = vunpack.c.h.b16 %v2144
      %v2449 = vunpack.c.l.b16 %v2145
      %v2450 = vunpack.c.h.b16 %v2145
      %v2451 = vunpack.c.l.b16 %v2146
      %v2452 = vunpack.c.h.b16 %v2146
      %v2453 = vunpack.c.l.b16 %v2147
      %v2454 = vunpack.c.h.b16 %v2147
      %v2455 = vunpack.c.l.b16 %v2148
      %v2456 = vunpack.c.h.b16 %v2148
      %v2457 = vunpack.c.l.b16 %v2149
      %v2458 = vunpack.c.h.b16 %v2149
      %v2459 = vunpack.c.l.b16 %v2150
      %v2460 = vunpack.c.h.b16 %v2150
      %v2461 = vunpack.c.l.b16 %v2151
      %v2462 = vunpack.c.h.b16 %v2151
      %v2463 = vunpack.c.l.b16 %v2152
      %v2464 = vunpack.c.h.b16 %v2152
      %v2465 = vunpack.c.l.b16 %v2153
      %v2466 = vunpack.c.h.b16 %v2153
      %v2467 = vunpack.c.l.b16 %v2154
      %v2468 = vunpack.c.h.b16 %v2154
      %v2469 = vunpack.c.l.b16 %v2155
      %v2470 = vunpack.c.h.b16 %v2155
      %v2471 = vunpack.c.l.b16 %v2156
      %v2472 = vunpack.c.h.b16 %v2156
      %v2473 = vunpack.c.l.b16 %v2157
      %v2474 = vunpack.c.h.b16 %v2157
      %v2475 = vunpack.c.l.b16 %v2158
      %v2476 = vunpack.c.h.b16 %v2158
      %v2477 = vunpack.c.l.b16 %v2159
      %v2478 = vunpack.c.h.b16 %v2159
      %v2479 = vunpack.c.l.b16 %v2160
      %v2480 = vunpack.c.h.b16 %v2160
      %v2481 = vunpack.c.l.b16 %v2161
      %v2482 = vunpack.c.h.b16 %v2161
      %v2483 = vunpack.c.l.b16 %v2162
      %v2484 = vunpack.c.h.b16 %v2162
      %v2485 = vunpack.c.l.b16 %v2163
      %v2486 = vunpack.c.h.b16 %v2163
      %v2487 = vunpack.c.l.b16 %v2164
      %v2488 = vunpack.c.h.b16 %v2164
      %v2489 = vunpack.c.l.b16 %v2165
      %v2490 = vunpack.c.h.b16 %v2165
      %v2491 = vunpack.c.l.b16 %v2166
      %v2492 = vunpack.c.h.b16 %v2166
      %v2493 = vunpack.c.l.b16 %v2167
      %v2494 = vunpack.c.h.b16 %v2167
      %v2495 = vunpack.c.l.b16 %v2168
      %v2496 = vunpack.c.h.b16 %v2168
      %v2497 = vunpack.c.l.b16 %v2169
      %v2498 = vunpack.c.h.b16 %v2169
      %v2499 = vunpack.c.l.b16 %v2170
      %v2500 = vunpack.c.h.b16 %v2170
      %v2501 = vunpack.c.l.b16 %v2171
      %v2502 = vunpack.c.h.b16 %v2171
      %v2503 = vunpack.c.l.b16 %v2172
      %v2504 = vunpack.c.h.b16 %v2172
      %v2505 = vunpack.c.l.b16 %v2173
      %v2506 = vunpack.c.h.b16 %v2173
      %v2507 = vunpack.c.l.b16 %v2174
      %v2508 = vunpack.c.h.b16 %v2174
      %v2509 = vunpack.c.l.b16 %v2175
      %v2510 = vunpack.c.h.b16 %v2175
      %v2511 = vunpack.c.l.b16 %v2176
      %v2512 = vunpack.c.h.b16 %v2176
      %v2513 = vunpack.c.l.b16 %v2177
      %v2514 = vunpack.c.h.b16 %v2177
      %v2515 = vunpack.c.l.b16 %v2178
      %v2516 = vunpack.c.h.b16 %v2178
      %v2517 = vunpack.c.l.b16 %v2179
      %v2518 = vunpack.c.h.b16 %v2179
      %v2519 = vunpack.c.l.b16 %v2180
      %v2520 = vunpack.c.h.b16 %v2180
      %v2521 = vunpack.c.l.b16 %v2181
      %v2522 = vunpack.c.h.b16 %v2181
      %v2523 = vunpack.c.l.b16 %v2182
      %v2524 = vunpack.c.h.b16 %v2182
      %v2525 = vunpack.c.l.b16 %v2183
      %v2526 = vunpack.c.h.b16 %v2183
      %v2527 = vunpack.c.l.b16 %v2184
      %v2528 = vunpack.c.h.b16 %v2184
      %v2529 = vunpack.c.l.b16 %v2185
      %v2530 = vunpack.c.h.b16 %v2185
      %v2531 = vunpack.c.l.b16 %v2186
      %v2532 = vunpack.c.h.b16 %v2186
      %v2533 = vunpack.c.l.b16 %v2187
      %v2534 = vunpack.c.h.b16 %v2187
      %v2535 = vunpack.c.l.b16 %v2188
      %v2536 = vunpack.c.h.b16 %v2188
      %v2537 = vunpack.c.l.b16 %v2189
      %v2538 = vunpack.c.h.b16 %v2189
      %v2539 = vunpack.c.l.b16 %v2190
      %v2540 = vunpack.c.h.b16 %v2190
      %v2541 = vunpack.c.l.b16 %v2191
      %v2542 = vunpack.c.h.b16 %v2191
      %v2543 = vunpack.c.l.b16 %v2192
      %v2544 = vunpack.c.h.b16 %v2192
      %v2545 = vunpack.c.l.b16 %v2193
      %v2546 = vunpack.c.h.b16 %v2193
      %v2547 = vunpack.c.l.b16 %v2194
      %v2548 = vunpack.c.h.b16 %v2194
      %v2549 = vunpack.c.l.b16 %v2195
      %v2550 = vunpack.c.h.b16 %v2195
      %v2551 = vunpack.c.l.b16 %v2196
      %v2552 = vunpack.c.h.b16 %v2196
      %v2553 = vunpack.c.l.b16 %v2197
      %v2554 = vunpack.c.h.b16 %v2197
      %v2555 = vunpack.c.l.b16 %v2198
      %v2556 = vunpack.c.h.b16 %v2198
      %v2557 = vunpack.c.l.b16 %v2199
      %v2558 = vunpack.c.h.b16 %v2199
      %v2559 = vunpack.c.l.b16 %v2200
      %v2560 = vunpack.c.h.b16 %v2200
      %v2561 = vunpack.c.l.b16 %v2201
      %v2562 = vunpack.c.h.b16 %v2201
      %v2563 = vunpack.c.l.b16 %v2202
      %v2564 = vunpack.c.h.b16 %v2202
      %v2565 = vunpack.c.l.b16 %v2203
      %v2566 = vunpack.c.h.b16 %v2203
      %v2567 = vunpack.c.l.b16 %v2204
      %v2568 = vunpack.c.h.b16 %v2204
      %v2569 = vunpack.c.l.b16 %v2205
      %v2570 = vunpack.c.h.b16 %v2205
      %v2571 = vunpack.c.l.b16 %v2206
      %v2572 = vunpack.c.h.b16 %v2206
      %v2573 = vunpack.c.l.b16 %v2207
      %v2574 = vunpack.c.h.b16 %v2207
      %v2575 = vunpack.c.l.b16 %v2208
      %v2576 = vunpack.c.h.b16 %v2208
      %v2577 = vunpack.c.l.b16 %v2209
      %v2578 = vunpack.c.h.b16 %v2209
      %v2579 = vunpack.c.l.b16 %v2210
      %v2580 = vunpack.c.h.b16 %v2210
      %v2581 = vunpack.c.l.b16 %v2211
      %v2582 = vunpack.c.h.b16 %v2211
      %v2583 = vunpack.c.l.b16 %v2212
      %v2584 = vunpack.c.h.b16 %v2212
      %v2585 = vunpack.c.l.b16 %v2213
      %v2586 = vunpack.c.h.b16 %v2213
      %v2587 = vunpack.c.l.b16 %v2214
      %v2588 = vunpack.c.h.b16 %v2214
      %v2589 = vunpack.c.l.b16 %v2215
      %v2590 = vunpack.c.h.b16 %v2215
      %v2591 = vunpack.c.l.b16 %v2216
      %v2592 = vunpack.c.h.b16 %v2216
      %v2593 = vunpack.c.l.b16 %v2217
      %v2594 = vunpack.c.h.b16 %v2217
      %v2595 = vunpack.c.l.b16 %v2218
      %v2596 = vunpack.c.h.b16 %v2218
      %v2597 = vunpack.c.l.b16 %v2219
      %v2598 = vunpack.c.h.b16 %v2219
      %v2599 = vunpack.c.l.b16 %v2220
      %v2600 = vunpack.c.h.b16 %v2220
      %v2601 = vunpack.c.l.b16 %v2221
      %v2602 = vunpack.c.h.b16 %v2221
      %v2603 = vunpack.c.l.b16 %v2222
      %v2604 = vunpack.c.h.b16 %v2222
      %v2605 = vunpack.c.l.b16 %v2223
      %v2606 = vunpack.c.h.b16 %v2223
      %v2607 = vunpack.c.l.b16 %v2224
      %v2608 = vunpack.c.h.b16 %v2224
      %v2609 = vunpack.c.l.b16 %v2225
      %v2610 = vunpack.c.h.b16 %v2225
      %v2611 = vunpack.c.l.b16 %v2226
      %v2612 = vunpack.c.h.b16 %v2226
      %v2613 = vunpack.c.l.b16 %v2227
      %v2614 = vunpack.c.h.b16 %v2227
      %v2615 = vunpack.c.l.b16 %v2228
      %v2616 = vunpack.c.h.b16 %v2228
      %v2617 = vunpack.c.l.b16 %v2229
      %v2618 = vunpack.c.h.b16 %v2229
      %v2619 = vunpack.c.l.b16 %v2230
      %v2620 = vunpack.c.h.b16 %v2230
      %v2621 = vunpack.c.l.b16 %v2231
      %v2622 = vunpack.c.h.b16 %v2231
      %v2623 = vunpack.c.l.b16 %v2232
      %v2624 = vunpack.c.h.b16 %v2232
      %v2625 = vunpack.c.l.b16 %v2233
      %v2626 = vunpack.c.h.b16 %v2233
      %v2627 = vunpack.c.l.b16 %v2234
      %v2628 = vunpack.c.h.b16 %v2234
      %v2629 = vpack.c.b16 %v2377, %v2373
      %v2630 = vpack.c.b16 %v2378, %v2374
      %v2631 = vpack.c.b16 %v2379, %v2375
      %v2632 = vpack.c.b16 %v2380, %v2376
      %v2633 = vpack.c.b16 %v2385, %v2381
      %v2634 = vpack.c.b16 %v2386, %v2382
      %v2635 = vpack.c.b16 %v2387, %v2383
      %v2636 = vpack.c.b16 %v2388, %v2384
      %v2637 = vpack.c.b16 %v2393, %v2389
      %v2638 = vpack.c.b16 %v2394, %v2390
      %v2639 = vpack.c.b16 %v2395, %v2391
      %v2640 = vpack.c.b16 %v2396, %v2392
      %v2641 = vpack.c.b16 %v2401, %v2397
      %v2642 = vpack.c.b16 %v2402, %v2398
      %v2643 = vpack.c.b16 %v2403, %v2399
      %v2644 = vpack.c.b16 %v2404, %v2400
      %v2645 = vpack.c.b16 %v2409, %v2405
      %v2646 = vpack.c.b16 %v2410, %v2406
      %v2647 = vpack.c.b16 %v2411, %v2407
      %v2648 = vpack.c.b16 %v2412, %v2408
      %v2649 = vpack.c.b16 %v2417, %v2413
      %v2650 = vpack.c.b16 %v2418, %v2414
      %v2651 = vpack.c.b16 %v2419, %v2415
      %v2652 = vpack.c.b16 %v2420, %v2416
      %v2653 = vpack.c.b16 %v2425, %v2421
      %v2654 = vpack.c.b16 %v2426, %v2422
      %v2655 = vpack.c.b16 %v2427, %v2423
      %v2656 = vpack.c.b16 %v2428, %v2424
      %v2657 = vpack.c.b16 %v2433, %v2429
      %v2658 = vpack.c.b16 %v2434, %v2430
      %v2659 = vpack.c.b16 %v2435, %v2431
      %v2660 = vpack.c.b16 %v2436, %v2432
      %v2661 = vpack.c.b16 %v2441, %v2437
      %v2662 = vpack.c.b16 %v2442, %v2438
      %v2663 = vpack.c.b16 %v2443, %v2439
      %v2664 = vpack.c.b16 %v2444, %v2440
      %v2665 = vpack.c.b16 %v2449, %v2445
      %v2666 = vpack.c.b16 %v2450, %v2446
      %v2667 = vpack.c.b16 %v2451, %v2447
      %v2668 = vpack.c.b16 %v2452, %v2448
      %v2669 = vpack.c.b16 %v2457, %v2453
      %v2670 = vpack.c.b16 %v2458, %v2454
      %v2671 = vpack.c.b16 %v2459, %v2455
      %v2672 = vpack.c.b16 %v2460, %v2456
      %v2673 = vpack.c.b16 %v2465, %v2461
      %v2674 = vpack.c.b16 %v2466, %v2462
      %v2675 = vpack.c.b16 %v2467, %v2463
      %v2676 = vpack.c.b16 %v2468, %v2464
      %v2677 = vpack.c.b16 %v2473, %v2469
      %v2678 = vpack.c.b16 %v2474, %v2470
      %v2679 = vpack.c.b16 %v2475, %v2471
      %v2680 = vpack.c.b16 %v2476, %v2472
      %v2681 = vpack.c.b16 %v2481, %v2477
      %v2682 = vpack.c.b16 %v2482, %v2478
      %v2683 = vpack.c.b16 %v2483, %v2479
      %v2684 = vpack.c.b16 %v2484, %v2480
      %v2685 = vpack.c.b16 %v2489, %v2485
      %v2686 = vpack.c.b16 %v2490, %v2486
      %v2687 = vpack.c.b16 %v2491, %v2487
      %v2688 = vpack.c.b16 %v2492, %v2488
      %v2689 = vpack.c.b16 %v2497, %v2493
      %v2690 = vpack.c.b16 %v2498, %v2494
      %v2691 = vpack.c.b16 %v2499, %v2495
      %v2692 = vpack.c.b16 %v2500, %v2496
      %v2693 = vpack.c.b16 %v2505, %v2501
      %v2694 = vpack.c.b16 %v2506, %v2502
      %v2695 = vpack.c.b16 %v2507, %v2503
      %v2696 = vpack.c.b16 %v2508, %v2504
      %v2697 = vpack.c.b16 %v2513, %v2509
      %v2698 = vpack.c.b16 %v2514, %v2510
      %v2699 = vpack.c.b16 %v2515, %v2511
      %v2700 = vpack.c.b16 %v2516, %v2512
      %v2701 = vpack.c.b16 %v2521, %v2517
      %v2702 = vpack.c.b16 %v2522, %v2518
      %v2703 = vpack.c.b16 %v2523, %v2519
      %v2704 = vpack.c.b16 %v2524, %v2520
      %v2705 = vpack.c.b16 %v2529, %v2525
      %v2706 = vpack.c.b16 %v2530, %v2526
      %v2707 = vpack.c.b16 %v2531, %v2527
      %v2708 = vpack.c.b16 %v2532, %v2528
      %v2709 = vpack.c.b16 %v2537, %v2533
      %v2710 = vpack.c.b16 %v2538, %v2534
      %v2711 = vpack.c.b16 %v2539, %v2535
      %v2712 = vpack.c.b16 %v2540, %v2536
      %v2713 = vpack.c.b16 %v2545, %v2541
      %v2714 = vpack.c.b16 %v2546, %v2542
      %v2715 = vpack.c.b16 %v2547, %v2543
      %v2716 = vpack.c.b16 %v2548, %v2544
      %v2717 = vpack.c.b16 %v2553, %v2549
      %v2718 = vpack.c.b16 %v2554, %v2550
      %v2719 = vpack.c.b16 %v2555, %v2551
      %v2720 = vpack.c.b16 %v2556, %v2552
      %v2721 = vpack.c.b16 %v2561, %v2557
      %v2722 = vpack.c.b16 %v2562, %v2558
      %v2723 = vpack.c.b16 %v2563, %v2559
      %v2724 = vpack.c.b16 %v2564, %v2560
      %v2725 = vpack.c.b16 %v2569, %v2565
      %v2726 = vpack.c.b16 %v2570, %v2566
      %v2727 = vpack.c.b16 %v2571, %v2567
      %v2728 = vpack.c.b16 %v2572, %v2568
      %v2729 = vpack.c.b16 %v2577, %v2573
      %v2730 = vpack.c.b16 %v2578, %v2574
      %v2731 = vpack.c.b16 %v2579, %v2575
      %v2732 = vpack.c.b16 %v2580, %v2576
      %v2733 = vpack.c.b16 %v2585, %v2581
      %v2734 = vpack.c.b16 %v2586, %v2582
      %v2735 = vpack.c.b16 %v2587, %v2583
      %v2736 = vpack.c.b16 %v2588, %v2584
      %v2737 = vpack.c.b16 %v2593, %v2589
      %v2738 = vpack.c.b16 %v2594, %v2590
      %v2739 = vpack.c.b16 %v2595, %v2591
      %v2740 = vpack.c.b16 %v2596, %v2592
      %v2741 = vpack.c.b16 %v2601, %v2597
      %v2742 = vpack.c.b16 %v2602, %v2598
      %v2743 = vpack.c.b16 %v2603, %v2599
      %v2744 = vpack.c.b16 %v2604, %v2600
      %v2745 = vpack.c.b16 %v2609, %v2605
      %v2746 = vpack.c.b16 %v2610, %v2606
      %v2747 = vpack.c.b16 %v2611, %v2607
      %v2748 = vpack.c.b16 %v2612, %v2608
      %v2749 = vpack.c.b16 %v2617, %v2613
      %v2750 = vpack.c.b16 %v2618, %v2614
      %v2751 = vpack.c.b16 %v2619, %v2615
      %v2752 = vpack.c.b16 %v2620, %v2616
      %v2753 = vpack.c.b16 %v2625, %v2621
      %v2754 = vpack.c.b16 %v2626, %v2622
      %v2755 = vpack.c.b16 %v2627, %v2623
      %v2756 = vpack.c.b16 %v2628, %v2624
      %2885 = vmatpush.bf16.msra.mxu0 %v2657
      %2886 = vmatpush.bf16.msra.mxu0 %v2653
      %2887 = vmatpush.bf16.msra.mxu0 %v2649
      %2888 = vmatpush.bf16.msra.mxu0 %v2645
      %2889 = vmatpush.bf16.msra.mxu0 %v2641
      %2890 = vmatpush.bf16.msra.mxu0 %v2637
      %2891 = vmatpush.bf16.msra.mxu0 %v2633
      %2892 = vmatpush.bf16.msra.mxu0 %v2629
      %2893 = vmatmul.bf16.gmra.mxu0 %v2103
      %v2894 = vpop.f32.mrf.mxu0
      %v2895 = vadd.f32 %v2237, %v2894
      %v2896 = vpop.f32.mrf.mxu0
      %2897 = vdwg.mxu0
      %2898 = vmatpush.bf16.msra.mxu0 %v2689
      %2899 = vmatpush.bf16.msra.mxu0 %v2685
      %2900 = vmatpush.bf16.msra.mxu0 %v2681
      %2901 = vmatpush.bf16.msra.mxu0 %v2677
      %2902 = vmatpush.bf16.msra.mxu0 %v2673
      %2903 = vmatpush.bf16.msra.mxu0 %v2669
      %2904 = vmatpush.bf16.msra.mxu0 %v2665
      %2905 = vmatpush.bf16.msra.mxu0 %v2661
      %2906 = vmatmul.bf16.gmra.mxu0 %v2104
      %v2907 = vpop.f32.mrf.mxu0
      %v2908 = vadd.f32 %v2895, %v2907
      %v2909 = vpop.f32.mrf.mxu0
      %2910 = vdwg.mxu0
      %2911 = vmatpush.bf16.msra.mxu0 %v2721
      %2912 = vmatpush.bf16.msra.mxu0 %v2717
      %2913 = vmatpush.bf16.msra.mxu0 %v2713
      %2914 = vmatpush.bf16.msra.mxu0 %v2709
      %2915 = vmatpush.bf16.msra.mxu0 %v2705
      %2916 = vmatpush.bf16.msra.mxu0 %v2701
      %2917 = vmatpush.bf16.msra.mxu0 %v2697
      %2918 = vmatpush.bf16.msra.mxu0 %v2693
      %2919 = vmatmul.bf16.gmra.mxu0 %v2105
      %v2920 = vpop.f32.mrf.mxu0
      %v2921 = vadd.f32 %v2908, %v2920
      %v2922 = vpop.f32.mrf.mxu0
      %2923 = vdwg.mxu0
      %2924 = vmatpush.bf16.msra.mxu0 %v2753
      %2925 = vmatpush.bf16.msra.mxu0 %v2749
      %2926 = vmatpush.bf16.msra.mxu0 %v2745
      %2927 = vmatpush.bf16.msra.mxu0 %v2741
      %2928 = vmatpush.bf16.msra.mxu0 %v2737
      %2929 = vmatpush.bf16.msra.mxu0 %v2733
      %2930 = vmatpush.bf16.msra.mxu0 %v2729
      %2931 = vmatpush.bf16.msra.mxu0 %v2725
      %2932 = vmatmul.bf16.gmra.mxu0 %v2106
      %v2933 = vpop.f32.mrf.mxu0
      %v2934 = vadd.f32 %v2921, %v2933
      %v2935 = vpop.f32.mrf.mxu0
      %2936 = vdwg.mxu0
      %2937 = vmatpush.bf16.msra.mxu0 %v2658
      %2938 = vmatpush.bf16.msra.mxu0 %v2654
      %2939 = vmatpush.bf16.msra.mxu0 %v2650
      %2940 = vmatpush.bf16.msra.mxu0 %v2646
      %2941 = vmatpush.bf16.msra.mxu0 %v2642
      %2942 = vmatpush.bf16.msra.mxu0 %v2638
      %2943 = vmatpush.bf16.msra.mxu0 %v2634
      %2944 = vmatpush.bf16.msra.mxu0 %v2630
      %2945 = vmatmul.bf16.gmra.mxu0 %v2103
      %v2946 = vpop.f32.mrf.mxu0
      %v2947 = vadd.f32 %v2238, %v2946
      %v2948 = vpop.f32.mrf.mxu0
      %2949 = vdwg.mxu0
      %2950 = vmatpush.bf16.msra.mxu0 %v2690
      %2951 = vmatpush.bf16.msra.mxu0 %v2686
      %2952 = vmatpush.bf16.msra.mxu0 %v2682
      %2953 = vmatpush.bf16.msra.mxu0 %v2678
      %2954 = vmatpush.bf16.msra.mxu0 %v2674
      %2955 = vmatpush.bf16.msra.mxu0 %v2670
      %2956 = vmatpush.bf16.msra.mxu0 %v2666
      %2957 = vmatpush.bf16.msra.mxu0 %v2662
      %2958 = vmatmul.bf16.gmra.mxu0 %v2104
      %v2959 = vpop.f32.mrf.mxu0
      %v2960 = vadd.f32 %v2947, %v2959
      %v2961 = vpop.f32.mrf.mxu0
      %2962 = vdwg.mxu0
      %2963 = vmatpush.bf16.msra.mxu0 %v2722
      %2964 = vmatpush.bf16.msra.mxu0 %v2718
      %2965 = vmatpush.bf16.msra.mxu0 %v2714
      %2966 = vmatpush.bf16.msra.mxu0 %v2710
      %2967 = vmatpush.bf16.msra.mxu0 %v2706
      %2968 = vmatpush.bf16.msra.mxu0 %v2702
      %2969 = vmatpush.bf16.msra.mxu0 %v2698
      %2970 = vmatpush.bf16.msra.mxu0 %v2694
      %2971 = vmatmul.bf16.gmra.mxu0 %v2105
      %v2972 = vpop.f32.mrf.mxu0
      %v2973 = vadd.f32 %v2960, %v2972
      %v2974 = vpop.f32.mrf.mxu0
      %2975 = vdwg.mxu0
      %2976 = vmatpush.bf16.msra.mxu0 %v2754
      %2977 = vmatpush.bf16.msra.mxu0 %v2750
      %2978 = vmatpush.bf16.msra.mxu0 %v2746
      %2979 = vmatpush.bf16.msra.mxu0 %v2742
      %2980 = vmatpush.bf16.msra.mxu0 %v2738
      %2981 = vmatpush.bf16.msra.mxu0 %v2734
      %2982 = vmatpush.bf16.msra.mxu0 %v2730
      %2983 = vmatpush.bf16.msra.mxu0 %v2726
      %2984 = vmatmul.bf16.gmra.mxu0 %v2106
      %v2985 = vpop.f32.mrf.mxu0
      %v2986 = vadd.f32 %v2973, %v2985
      %v2987 = vpop.f32.mrf.mxu0
      %2988 = vdwg.mxu0
      %2989 = vmatpush.bf16.msra.mxu0 %v2659
      %2990 = vmatpush.bf16.msra.mxu0 %v2655
      %2991 = vmatpush.bf16.msra.mxu0 %v2651
      %2992 = vmatpush.bf16.msra.mxu0 %v2647
      %2993 = vmatpush.bf16.msra.mxu0 %v2643
      %2994 = vmatpush.bf16.msra.mxu0 %v2639
      %2995 = vmatpush.bf16.msra.mxu0 %v2635
      %2996 = vmatpush.bf16.msra.mxu0 %v2631
      %2997 = vmatmul.bf16.gmra.mxu0 %v2103
      %v2998 = vpop.f32.mrf.mxu0
      %v2999 = vadd.f32 %v2239, %v2998
      %v3000 = vpop.f32.mrf.mxu0
      %3001 = vdwg.mxu0
      %3002 = vmatpush.bf16.msra.mxu0 %v2691
      %3003 = vmatpush.bf16.msra.mxu0 %v2687
      %3004 = vmatpush.bf16.msra.mxu0 %v2683
      %3005 = vmatpush.bf16.msra.mxu0 %v2679
      %3006 = vmatpush.bf16.msra.mxu0 %v2675
      %3007 = vmatpush.bf16.msra.mxu0 %v2671
      %3008 = vmatpush.bf16.msra.mxu0 %v2667
      %3009 = vmatpush.bf16.msra.mxu0 %v2663
      %3010 = vmatmul.bf16.gmra.mxu0 %v2104
      %v3011 = vpop.f32.mrf.mxu0
      %v3012 = vadd.f32 %v2999, %v3011
      %v3013 = vpop.f32.mrf.mxu0
      %3014 = vdwg.mxu0
      %3015 = vmatpush.bf16.msra.mxu0 %v2723
      %3016 = vmatpush.bf16.msra.mxu0 %v2719
      %3017 = vmatpush.bf16.msra.mxu0 %v2715
      %3018 = vmatpush.bf16.msra.mxu0 %v2711
      %3019 = vmatpush.bf16.msra.mxu0 %v2707
      %3020 = vmatpush.bf16.msra.mxu0 %v2703
      %3021 = vmatpush.bf16.msra.mxu0 %v2699
      %3022 = vmatpush.bf16.msra.mxu0 %v2695
      %3023 = vmatmul.bf16.gmra.mxu0 %v2105
      %v3024 = vpop.f32.mrf.mxu0
      %v3025 = vadd.f32 %v3012, %v3024
      %v3026 = vpop.f32.mrf.mxu0
      %3027 = vdwg.mxu0
      %3028 = vmatpush.bf16.msra.mxu0 %v2755
      %3029 = vmatpush.bf16.msra.mxu0 %v2751
      %3030 = vmatpush.bf16.msra.mxu0 %v2747
      %3031 = vmatpush.bf16.msra.mxu0 %v2743
      %3032 = vmatpush.bf16.msra.mxu0 %v2739
      %3033 = vmatpush.bf16.msra.mxu0 %v2735
      %3034 = vmatpush.bf16.msra.mxu0 %v2731
      %3035 = vmatpush.bf16.msra.mxu0 %v2727
      %3036 = vmatmul.bf16.gmra.mxu0 %v2106
      %v3037 = vpop.f32.mrf.mxu0
      %v3038 = vadd.f32 %v3025, %v3037
      %v3039 = vpop.f32.mrf.mxu0
      %3040 = vdwg.mxu0
      %3041 = vmatpush.bf16.msra.mxu0 %v2660
      %3042 = vmatpush.bf16.msra.mxu0 %v2656
      %3043 = vmatpush.bf16.msra.mxu0 %v2652
      %3044 = vmatpush.bf16.msra.mxu0 %v2648
      %3045 = vmatpush.bf16.msra.mxu0 %v2644
      %3046 = vmatpush.bf16.msra.mxu0 %v2640
      %3047 = vmatpush.bf16.msra.mxu0 %v2636
      %3048 = vmatpush.bf16.msra.mxu0 %v2632
      %3049 = vmatmul.bf16.gmra.mxu0 %v2103
      %v3050 = vpop.f32.mrf.mxu0
      %v3051 = vadd.f32 %v2240, %v3050
      %v3052 = vpop.f32.mrf.mxu0
      %3053 = vdwg.mxu0
      %3054 = vmatpush.bf16.msra.mxu0 %v2692
      %3055 = vmatpush.bf16.msra.mxu0 %v2688
      %3056 = vmatpush.bf16.msra.mxu0 %v2684
      %3057 = vmatpush.bf16.msra.mxu0 %v2680
      %3058 = vmatpush.bf16.msra.mxu0 %v2676
      %3059 = vmatpush.bf16.msra.mxu0 %v2672
      %3060 = vmatpush.bf16.msra.mxu0 %v2668
      %3061 = vmatpush.bf16.msra.mxu0 %v2664
      %3062 = vmatmul.bf16.gmra.mxu0 %v2104
      %v3063 = vpop.f32.mrf.mxu0
      %v3064 = vadd.f32 %v3051, %v3063
      %v3065 = vpop.f32.mrf.mxu0
      %3066 = vdwg.mxu0
      %3067 = vmatpush.bf16.msra.mxu0 %v2724
      %3068 = vmatpush.bf16.msra.mxu0 %v2720
      %3069 = vmatpush.bf16.msra.mxu0 %v2716
      %3070 = vmatpush.bf16.msra.mxu0 %v2712
      %3071 = vmatpush.bf16.msra.mxu0 %v2708
      %3072 = vmatpush.bf16.msra.mxu0 %v2704
      %3073 = vmatpush.bf16.msra.mxu0 %v2700
      %3074 = vmatpush.bf16.msra.mxu0 %v2696
      %3075 = vmatmul.bf16.gmra.mxu0 %v2105
      %v3076 = vpop.f32.mrf.mxu0
      %v3077 = vadd.f32 %v3064, %v3076
      %v3078 = vpop.f32.mrf.mxu0
      %3079 = vdwg.mxu0
      %3080 = vmatpush.bf16.msra.mxu0 %v2756
      %3081 = vmatpush.bf16.msra.mxu0 %v2752
      %3082 = vmatpush.bf16.msra.mxu0 %v2748
      %3083 = vmatpush.bf16.msra.mxu0 %v2744
      %3084 = vmatpush.bf16.msra.mxu0 %v2740
      %3085 = vmatpush.bf16.msra.mxu0 %v2736
      %3086 = vmatpush.bf16.msra.mxu0 %v2732
      %3087 = vmatpush.bf16.msra.mxu0 %v2728
      %3088 = vmatmul.bf16.gmra.mxu0 %v2106
      %v3089 = vpop.f32.mrf.mxu0
      %v3090 = vadd.f32 %v3077, %v3089
      %v3091 = vpop.f32.mrf.mxu0
      %3092 = vdwg.mxu0
      %v3093 = vmax.f32 %v2934, 0.0
      %v3094 = vmax.f32 %v2986, 0.0
      %v3095 = vmax.f32 %v3038, 0.0
      %v3096 = vmax.f32 %v3090, 0.0
      %v3097 = vpack.c.bf16 %v3093, %v3093
      %v3098 = vpack.c.bf16 %v3094, %v3094
      %v3099 = vpack.c.bf16 %v3095, %v3095
      %v3100 = vpack.c.bf16 %v3096, %v3096
      %v3101 = vld [vmem:[#allocation8] sm:$0xf]
      %v3102 = vld [vmem:[#allocation8 + $0x4] sm:$0xf]
      %v3103 = vld [vmem:[#allocation8 + $0x8] sm:$0xf]
      %v3104 = vld [vmem:[#allocation8 + $0xc] sm:$0xf]
      %v3105 = vld [vmem:[#allocation8 + $0x10] sm:$0xf]
      %v3106 = vld [vmem:[#allocation8 + $0x14] sm:$0xf]
      %v3107 = vld [vmem:[#allocation8 + $0x18] sm:$0xf]
      %v3108 = vld [vmem:[#allocation8 + $0x1c] sm:$0xf]
      %v3109 = vld [vmem:[#allocation8 + $0x20] sm:$0xf]
      %v3110 = vld [vmem:[#allocation8 + $0x24] sm:$0xf]
      %v3111 = vld [vmem:[#allocation8 + $0x28] sm:$0xf]
      %v3112 = vld [vmem:[#allocation8 + $0x2c] sm:$0xf]
      %v3113 = vld [vmem:[#allocation8 + $0x30] sm:$0xf]
      %v3114 = vld [vmem:[#allocation8 + $0x34] sm:$0xf]
      %v3115 = vld [vmem:[#allocation8 + $0x38] sm:$0xf]
      %v3116 = vld [vmem:[#allocation8 + $0x3c] sm:$0xf]
      %v3117 = vld [vmem:[#allocation8 + $0x40] sm:$0xf]
      %v3118 = vld [vmem:[#allocation8 + $0x44] sm:$0xf]
      %v3119 = vld [vmem:[#allocation8 + $0x48] sm:$0xf]
      %v3120 = vld [vmem:[#allocation8 + $0x4c] sm:$0xf]
      %v3121 = vld [vmem:[#allocation8 + $0x50] sm:$0xf]
      %v3122 = vld [vmem:[#allocation8 + $0x54] sm:$0xf]
      %v3123 = vld [vmem:[#allocation8 + $0x58] sm:$0xf]
      %v3124 = vld [vmem:[#allocation8 + $0x5c] sm:$0xf]
      %v3125 = vld [vmem:[#allocation8 + $0x60] sm:$0xf]
      %v3126 = vld [vmem:[#allocation8 + $0x64] sm:$0xf]
      %v3127 = vld [vmem:[#allocation8 + $0x68] sm:$0xf]
      %v3128 = vld [vmem:[#allocation8 + $0x6c] sm:$0xf]
      %v3129 = vld [vmem:[#allocation8 + $0x70] sm:$0xf]
      %v3130 = vld [vmem:[#allocation8 + $0x74] sm:$0xf]
      %v3131 = vld [vmem:[#allocation8 + $0x78] sm:$0xf]
      %v3132 = vld [vmem:[#allocation8 + $0x7c] sm:$0xf]
      %v3133 = vld [vmem:[#allocation8 + $0x80] sm:$0xf]
      %v3134 = vld [vmem:[#allocation8 + $0x84] sm:$0xf]
      %v3135 = vld [vmem:[#allocation8 + $0x88] sm:$0xf]
      %v3136 = vld [vmem:[#allocation8 + $0x8c] sm:$0xf]
      %v3137 = vld [vmem:[#allocation8 + $0x90] sm:$0xf]
      %v3138 = vld [vmem:[#allocation8 + $0x94] sm:$0xf]
      %v3139 = vld [vmem:[#allocation8 + $0x98] sm:$0xf]
      %v3140 = vld [vmem:[#allocation8 + $0x9c] sm:$0xf]
      %v3141 = vld [vmem:[#allocation8 + $0xa0] sm:$0xf]
      %v3142 = vld [vmem:[#allocation8 + $0xa4] sm:$0xf]
      %v3143 = vld [vmem:[#allocation8 + $0xa8] sm:$0xf]
      %v3144 = vld [vmem:[#allocation8 + $0xac] sm:$0xf]
      %v3145 = vld [vmem:[#allocation8 + $0xb0] sm:$0xf]
      %v3146 = vld [vmem:[#allocation8 + $0xb4] sm:$0xf]
      %v3147 = vld [vmem:[#allocation8 + $0xb8] sm:$0xf]
      %v3148 = vld [vmem:[#allocation8 + $0xbc] sm:$0xf]
      %v3149 = vld [vmem:[#allocation8 + $0xc0] sm:$0xf]
      %v3150 = vld [vmem:[#allocation8 + $0xc4] sm:$0xf]
      %v3151 = vld [vmem:[#allocation8 + $0xc8] sm:$0xf]
      %v3152 = vld [vmem:[#allocation8 + $0xcc] sm:$0xf]
      %v3153 = vld [vmem:[#allocation8 + $0xd0] sm:$0xf]
      %v3154 = vld [vmem:[#allocation8 + $0xd4] sm:$0xf]
      %v3155 = vld [vmem:[#allocation8 + $0xd8] sm:$0xf]
      %v3156 = vld [vmem:[#allocation8 + $0xdc] sm:$0xf]
      %v3157 = vld [vmem:[#allocation8 + $0xe0] sm:$0xf]
      %v3158 = vld [vmem:[#allocation8 + $0xe4] sm:$0xf]
      %v3159 = vld [vmem:[#allocation8 + $0xe8] sm:$0xf]
      %v3160 = vld [vmem:[#allocation8 + $0xec] sm:$0xf]
      %v3161 = vld [vmem:[#allocation8 + $0xf0] sm:$0xf]
      %v3162 = vld [vmem:[#allocation8 + $0xf4] sm:$0xf]
      %v3163 = vld [vmem:[#allocation8 + $0xf8] sm:$0xf]
      %v3164 = vld [vmem:[#allocation8 + $0xfc] sm:$0xf]
      %v3165 = vld [vmem:[%s6] sm:$0x1]
      %v3167 = vperm.slane %v3165, 0
      %v3233 = vunpack.c.l.b16 %v3101
      %v3234 = vunpack.c.l.b16 %v3102
      %v3235 = vunpack.c.l.b16 %v3103
      %v3236 = vunpack.c.l.b16 %v3104
      %v3237 = vunpack.c.l.b16 %v3105
      %v3238 = vunpack.c.l.b16 %v3106
      %v3239 = vunpack.c.l.b16 %v3107
      %v3240 = vunpack.c.l.b16 %v3108
      %v3241 = vunpack.c.l.b16 %v3109
      %v3242 = vunpack.c.l.b16 %v3110
      %v3243 = vunpack.c.l.b16 %v3111
      %v3244 = vunpack.c.l.b16 %v3112
      %v3245 = vunpack.c.l.b16 %v3113
      %v3246 = vunpack.c.l.b16 %v3114
      %v3247 = vunpack.c.l.b16 %v3115
      %v3248 = vunpack.c.l.b16 %v3116
      %v3249 = vunpack.c.l.b16 %v3117
      %v3250 = vunpack.c.l.b16 %v3118
      %v3251 = vunpack.c.l.b16 %v3119
      %v3252 = vunpack.c.l.b16 %v3120
      %v3253 = vunpack.c.l.b16 %v3121
      %v3254 = vunpack.c.l.b16 %v3122
      %v3255 = vunpack.c.l.b16 %v3123
      %v3256 = vunpack.c.l.b16 %v3124
      %v3257 = vunpack.c.l.b16 %v3125
      %v3258 = vunpack.c.l.b16 %v3126
      %v3259 = vunpack.c.l.b16 %v3127
      %v3260 = vunpack.c.l.b16 %v3128
      %v3261 = vunpack.c.l.b16 %v3129
      %v3262 = vunpack.c.l.b16 %v3130
      %v3263 = vunpack.c.l.b16 %v3131
      %v3264 = vunpack.c.l.b16 %v3132
      %v3265 = vunpack.c.l.b16 %v3133
      %v3266 = vunpack.c.l.b16 %v3134
      %v3267 = vunpack.c.l.b16 %v3135
      %v3268 = vunpack.c.l.b16 %v3136
      %v3269 = vunpack.c.l.b16 %v3137
      %v3270 = vunpack.c.l.b16 %v3138
      %v3271 = vunpack.c.l.b16 %v3139
      %v3272 = vunpack.c.l.b16 %v3140
      %v3273 = vunpack.c.l.b16 %v3141
      %v3274 = vunpack.c.l.b16 %v3142
      %v3275 = vunpack.c.l.b16 %v3143
      %v3276 = vunpack.c.l.b16 %v3144
      %v3277 = vunpack.c.l.b16 %v3145
      %v3278 = vunpack.c.l.b16 %v3146
      %v3279 = vunpack.c.l.b16 %v3147
      %v3280 = vunpack.c.l.b16 %v3148
      %v3281 = vunpack.c.l.b16 %v3149
      %v3282 = vunpack.c.l.b16 %v3150
      %v3283 = vunpack.c.l.b16 %v3151
      %v3284 = vunpack.c.l.b16 %v3152
      %v3285 = vunpack.c.l.b16 %v3153
      %v3286 = vunpack.c.l.b16 %v3154
      %v3287 = vunpack.c.l.b16 %v3155
      %v3288 = vunpack.c.l.b16 %v3156
      %v3289 = vunpack.c.l.b16 %v3157
      %v3290 = vunpack.c.l.b16 %v3158
      %v3291 = vunpack.c.l.b16 %v3159
      %v3292 = vunpack.c.l.b16 %v3160
      %v3293 = vunpack.c.l.b16 %v3161
      %v3294 = vunpack.c.l.b16 %v3162
      %v3295 = vunpack.c.l.b16 %v3163
      %v3296 = vunpack.c.l.b16 %v3164
      %v3297 = vpack.c.b16 %v3234, %v3233
      %v3298 = vpack.c.b16 %v3236, %v3235
      %v3299 = vpack.c.b16 %v3238, %v3237
      %v3300 = vpack.c.b16 %v3240, %v3239
      %v3301 = vpack.c.b16 %v3242, %v3241
      %v3302 = vpack.c.b16 %v3244, %v3243
      %v3303 = vpack.c.b16 %v3246, %v3245
      %v3304 = vpack.c.b16 %v3248, %v3247
      %v3305 = vpack.c.b16 %v3250, %v3249
      %v3306 = vpack.c.b16 %v3252, %v3251
      %v3307 = vpack.c.b16 %v3254, %v3253
      %v3308 = vpack.c.b16 %v3256, %v3255
      %v3309 = vpack.c.b16 %v3258, %v3257
      %v3310 = vpack.c.b16 %v3260, %v3259
      %v3311 = vpack.c.b16 %v3262, %v3261
      %v3312 = vpack.c.b16 %v3264, %v3263
      %v3313 = vpack.c.b16 %v3266, %v3265
      %v3314 = vpack.c.b16 %v3268, %v3267
      %v3315 = vpack.c.b16 %v3270, %v3269
      %v3316 = vpack.c.b16 %v3272, %v3271
      %v3317 = vpack.c.b16 %v3274, %v3273
      %v3318 = vpack.c.b16 %v3276, %v3275
      %v3319 = vpack.c.b16 %v3278, %v3277
      %v3320 = vpack.c.b16 %v3280, %v3279
      %v3321 = vpack.c.b16 %v3282, %v3281
      %v3322 = vpack.c.b16 %v3284, %v3283
      %v3323 = vpack.c.b16 %v3286, %v3285
      %v3324 = vpack.c.b16 %v3288, %v3287
      %v3325 = vpack.c.b16 %v3290, %v3289
      %v3326 = vpack.c.b16 %v3292, %v3291
      %v3327 = vpack.c.b16 %v3294, %v3293
      %v3328 = vpack.c.b16 %v3296, %v3295
      %3361 = vmatpush.bf16.msra.mxu0 %v3304
      %3362 = vmatpush.bf16.msra.mxu0 %v3303
      %3363 = vmatpush.bf16.msra.mxu0 %v3302
      %3364 = vmatpush.bf16.msra.mxu0 %v3301
      %3365 = vmatpush.bf16.msra.mxu0 %v3300
      %3366 = vmatpush.bf16.msra.mxu0 %v3299
      %3367 = vmatpush.bf16.msra.mxu0 %v3298
      %3368 = vmatpush.bf16.msra.mxu0 %v3297
      %3369 = vmatmul.bf16.gmra.mxu0 %v3097
      %v3370 = vpop.f32.mrf.mxu0
      %v3371 = vadd.f32 %v3167, %v3370
      %v3372 = vpop.f32.mrf.mxu0
      %3373 = vdwg.mxu0
      %3374 = vmatpush.bf16.msra.mxu0 %v3312
      %3375 = vmatpush.bf16.msra.mxu0 %v3311
      %3376 = vmatpush.bf16.msra.mxu0 %v3310
      %3377 = vmatpush.bf16.msra.mxu0 %v3309
      %3378 = vmatpush.bf16.msra.mxu0 %v3308
      %3379 = vmatpush.bf16.msra.mxu0 %v3307
      %3380 = vmatpush.bf16.msra.mxu0 %v3306
      %3381 = vmatpush.bf16.msra.mxu0 %v3305
      %3382 = vmatmul.bf16.gmra.mxu0 %v3098
      %v3383 = vpop.f32.mrf.mxu0
      %v3384 = vadd.f32 %v3371, %v3383
      %v3385 = vpop.f32.mrf.mxu0
      %3386 = vdwg.mxu0
      %3387 = vmatpush.bf16.msra.mxu0 %v3320
      %3388 = vmatpush.bf16.msra.mxu0 %v3319
      %3389 = vmatpush.bf16.msra.mxu0 %v3318
      %3390 = vmatpush.bf16.msra.mxu0 %v3317
      %3391 = vmatpush.bf16.msra.mxu0 %v3316
      %3392 = vmatpush.bf16.msra.mxu0 %v3315
      %3393 = vmatpush.bf16.msra.mxu0 %v3314
      %3394 = vmatpush.bf16.msra.mxu0 %v3313
      %3395 = vmatmul.bf16.gmra.mxu0 %v3099
      %v3396 = vpop.f32.mrf.mxu0
      %v3397 = vadd.f32 %v3384, %v3396
      %v3398 = vpop.f32.mrf.mxu0
      %3399 = vdwg.mxu0
      %3400 = vmatpush.bf16.msra.mxu0 %v3328
      %3401 = vmatpush.bf16.msra.mxu0 %v3327
      %3402 = vmatpush.bf16.msra.mxu0 %v3326
      %3403 = vmatpush.bf16.msra.mxu0 %v3325
      %3404 = vmatpush.bf16.msra.mxu0 %v3324
      %3405 = vmatpush.bf16.msra.mxu0 %v3323
      %3406 = vmatpush.bf16.msra.mxu0 %v3322
      %3407 = vmatpush.bf16.msra.mxu0 %v3321
      %3408 = vmatmul.bf16.gmra.mxu0 %v3100
      %v3409 = vpop.f32.mrf.mxu0
      %v3410 = vadd.f32 %v3397, %v3409
      %v3411 = vpop.f32.mrf.mxu0
      %3412 = vdwg.mxu0
      %3413 = vst [vmem:[#allocation9] sm:$0xff] %v3410
    $region49: #{vgg16_classifier_forward.1} parent=1 // pred_fallthru
      _
    // Predicated region
    $region50: #{vgg16_classifier_forward.1} parent=1 // pred_check
      _
    $region51: #{vgg16_classifier_forward.1} parent=1 // pred_check_branch
      %3415 = sbr.rel (0) target = $region53
    $region52: #{vgg16_classifier_forward.1} parent=1 // pred_region
      %3417 = vsyncadd [#allocation5], 0
      %s3419 = sshll.u32 [#allocation9], 4
      %s3420 = int_to_ptr.vmem [resolvable:$true] %s3419
      %s3421 = sshll.u32 %s7, 4
      %s3422 = int_to_ptr.hbm [resolvable:$true] %s3421
      %3424 = dma.vmem_to_hbm [thread:$0]  %s3420, 128, %s3422, [#allocation5]
    $region53: #{vgg16_classifier_forward.1} parent=1 // pred_fallthru
      _
    // Predicated region
    $region54: #{vgg16_classifier_forward.1} parent=1 // pred_check
      _
    $region55: #{vgg16_classifier_forward.1} parent=1 // pred_check_branch
      %3426 = sbr.rel (0) target = $region57
    $region56: #{vgg16_classifier_forward.1} parent=1 // pred_region
      %3428 = dma.done [#allocation5], 128
    $region57: #{vgg16_classifier_forward.1} parent=1 // pred_fallthru
      _
    %3429 = vsyncpa [#allocation4], 1
    %3430 = vsyncpa [#allocation7], 1
    %3431 = vsyncpa [#allocation5], 1

</llo_original>
